<compile_context>
chip_gen: v7x
topology: tpu7x:2x2x1
jax: 0.10.0
libtpu: 0.0.40
codegen_flags: <defaults>
</compile_context>

<pallas_src>
import functools

import jax
import jax.numpy as jnp
from jax.experimental import pallas as pl
from jax.experimental.pallas import tpu as pltpu

NEG_SLOPE = 0.01  # PyTorch nn.LeakyReLU default negative_slope


def _leaky_relu(x):
    return jnp.where(x > 0, x, NEG_SLOPE * x)


def softselector_kernel(hyper_ref, h_ref, x_ref, ym_ref, loss_ref,
                        w1x_ref, w1ym_ref, w1h_ref, w2_ref, small_ref,
                        pi_ref, obj_ref, *, hidden_dim, arch_dim, mxu_dtype):
    """One selector evaluation per grid step (grid axis = batch of instances)."""
    f32 = jnp.float32
    # Runtime SMEM scalars -> no recompile when hyperparameters change.
    lambda1 = hyper_ref[0]
    lambda2 = hyper_ref[1]
    subset_size = hyper_ref[2]
    b3 = hyper_ref[3]

    H, A = hidden_dim, arch_dim
    small = small_ref[...]                     # (1, H + 2A) f32, packed constants
    b1 = small[:, :H]                          # (1, H)
    b2 = small[:, H:H + A]                     # (1, A)
    w3 = small[:, H + A:]                      # (1, A)

    # ---- layer 1: fused input assembly, weights pre-split (aligned by construction)
    # torch input = [h.mean(0) bcast | x | y | m]; the h_mean part is shared by
    # every row so it folds into the bias (one tiny M=1 MXU push).
    h_mean = jnp.mean(h_ref[...].astype(f32), axis=0, keepdims=True)     # (1, arch)
    row = jnp.dot(h_mean.astype(mxu_dtype), w1h_ref[...],
                  preferred_element_type=f32) + b1                       # (1, H)
    h1 = jnp.dot(x_ref[...], w1x_ref[...], preferred_element_type=f32)   # (N, H)
    h1 = h1 + jnp.dot(ym_ref[...], w1ym_ref[...], preferred_element_type=f32)
    h1 = _leaky_relu(h1 + row)                                           # (N, H) f32

    # ---- layer 2 ----
    h2 = jnp.dot(h1.astype(mxu_dtype), w2_ref[...],
                 preferred_element_type=f32) + b2
    h2 = _leaky_relu(h2)                                                 # (N, A) f32

    # ---- layer 3, lane-dense: (1, A) . (N, A)^T -> (1, N) ----
    # Tiny dot; kept in f32.  TODO(synk): for large tiled N compute the whole
    # chain transposed (N on lanes) so this relayout disappears.
    logit = jax.lax.dot_general(w3, h2, (((1,), (1,)), ((), ())),
                                preferred_element_type=f32) + b3         # (1, N)
    pi = jax.nn.sigmoid(logit)                                           # (1, N) f32
    pi_ref[...] = pi

    # ---- objective: single lane-axis reductions ----
    loss = loss_ref[...]                                                 # (1, N) f32
    dot_term = jnp.sum(pi * loss, axis=-1, keepdims=True)                # <pi, loss>
    sum_pi = jnp.sum(pi, axis=-1, keepdims=True)
    norm_term = jnp.abs(sum_pi - subset_size)                            # scalar .norm()

    # entropy of Categorical(probs=softmax(pi)), exact logsumexp form:
    #   ent = (m + log z) - sum(e * pi) / z,  e = exp(pi - m), z = sum(e)
    m_max = jnp.max(pi, axis=-1, keepdims=True)
    e = jnp.exp(pi - m_max)
    z = jnp.sum(e, axis=-1, keepdims=True)
    ent = (m_max + jnp.log(z)) - jnp.sum(e * pi, axis=-1, keepdims=True) / z

    obj = dot_term + lambda1 * norm_term - lambda2 * ent                 # (1, 1)
    # Lane-padded scalar output row (block-aligned; wrapper reads [:, 0, 0]).
    obj_ref[...] = jnp.broadcast_to(obj, obj_ref.shape)                  # (1, 128)


@functools.partial(jax.jit, static_argnames=("subset_size", "mxu_dtype"))
def soft_selector_forward_batched(h, m_logits, x, y, loss_xy, params, *,
                                  lambda1=1.0, lambda2=0.1, subset_size=8,
                                  mxu_dtype=jnp.bfloat16):
    """B independent SoftSelector.forward evaluations in one pallas_call.

    Shapes: h (B, n_h, arch), m_logits (B, N, C), x (B, N, D), y (B, N, C),
            loss_xy (B, N).  Returns (obj_fn (B,), pi_xy (B, N), top_k (B, k)).
    """
    f32 = jnp.float32
    B, N, data_dim = x.shape
    n_h, arch_dim = h.shape[1], h.shape[2]
    num_classes = y.shape[-1]
    w1, b1, w2, b2, w3, b3 = params
    d_in, hidden_dim = w1.shape
    A = w2.shape[1]
    C2 = 2 * num_classes
    assert d_in == arch_dim + data_dim + C2

    # SMEM scalars: lambda1, lambda2, subset_size, b3 (runtime values).
    hyper = jnp.stack([jnp.asarray(lambda1, f32), jnp.asarray(lambda2, f32),
                       jnp.asarray(subset_size, f32),
                       jnp.asarray(b3, f32).reshape(())])                 # (4,)

    # Packed tiny constants: [b1 | b2 | w3^T]  (1, H + 2A), f32.
    small = jnp.concatenate([jnp.asarray(b1, f32).reshape(1, hidden_dim),
                             jnp.asarray(b2, f32).reshape(1, A),
                             jnp.asarray(w3, f32).reshape(1, A)], axis=1)

    # Pre-split W1 rows in the wrapper -> no in-kernel slices / alignment hazards.
    w1 = jnp.asarray(w1, f32)
    w1h = w1[:arch_dim].astype(mxu_dtype)                                 # (arch, H)
    w1x = w1[arch_dim:arch_dim + data_dim].astype(mxu_dtype)              # (D, H)
    w1ym = w1[arch_dim + data_dim:].astype(mxu_dtype)                     # (2C, H)
    w2_c = jnp.asarray(w2, f32).astype(mxu_dtype)                         # (H, A)

    ym = jnp.concatenate([y, m_logits], axis=-1).astype(mxu_dtype)        # (B, N, 2C)
    x_c = x.astype(mxu_dtype)
    h_c = h.astype(f32)
    loss_row = jnp.asarray(loss_xy, f32).reshape(B, 1, N)                 # lane-dense

    kernel = functools.partial(softselector_kernel, hidden_dim=hidden_dim,
                               arch_dim=A, mxu_dtype=mxu_dtype)

    smem = pltpu.MemorySpace.SMEM
    out_pi, out_obj = pl.pallas_call(
        kernel,
        grid=(B,),
        in_specs=[
            pl.BlockSpec(memory_space=smem),                              # hyper
            pl.BlockSpec((None, n_h, arch_dim), lambda b: (b, 0, 0)),     # h
            pl.BlockSpec((None, N, data_dim), lambda b: (b, 0, 0)),       # x
            pl.BlockSpec((None, N, C2), lambda b: (b, 0, 0)),             # ym
            pl.BlockSpec((None, 1, N), lambda b: (b, 0, 0)),              # loss
            pl.BlockSpec((data_dim, hidden_dim), lambda b: (0, 0)),       # w1x
            pl.BlockSpec((C2, hidden_dim), lambda b: (0, 0)),             # w1ym
            pl.BlockSpec((arch_dim, hidden_dim), lambda b: (0, 0)),       # w1h
            pl.BlockSpec((hidden_dim, A), lambda b: (0, 0)),              # w2
            pl.BlockSpec((1, hidden_dim + 2 * A), lambda b: (0, 0)),      # small
        ],
        out_specs=(
            pl.BlockSpec((None, 1, N), lambda b: (b, 0, 0)),              # pi
            pl.BlockSpec((None, 1, 128), lambda b: (b, 0, 0)),            # obj (padded)
        ),
        out_shape=(
            jax.ShapeDtypeStruct((B, 1, N), f32),
            jax.ShapeDtypeStruct((B, 1, 128), f32),
        ),
        compiler_params=pltpu.CompilerParams(
            dimension_semantics=("parallel",)),   # shards the batch axis on v7x
    )(hyper, h_c, x_c, ym, loss_row, w1x, w1ym, w1h, w2_c, small)

    pi_xy = out_pi[:, 0, :]                       # (B, N)
    obj_fn = out_obj[:, 0, 0]                     # (B,)
    # TODO(synk): torch.topk has no clean single-kernel Pallas TPU primitive
    # (needs a sort network); done in plain JAX on the kernel output.
    top_k = jax.lax.top_k(pi_xy, subset_size)[0]  # (B, k) values
    return obj_fn, pi_xy, top_k


def soft_selector_forward(h, m_logits, x, y, loss_xy, params, **kw):
    """Single-instance SoftSelector.forward (wraps the batched kernel, B=1)."""
    obj, pi, top_k = soft_selector_forward_batched(
        h[None], m_logits[None], x[None], y[None], loss_xy[None], params, **kw)
    return obj[0], pi[0], top_k[0]


def _init_linear(key, fan_in, fan_out):
    # Matches torch.nn.Linear default init: U(-1/sqrt(fan_in), 1/sqrt(fan_in)).
    kw, kb = jax.random.split(key)
    bound = 1.0 / jnp.sqrt(fan_in)
    w = jax.random.uniform(kw, (fan_in, fan_out), jnp.float32, -bound, bound)
    b = jax.random.uniform(kb, (1, fan_out), jnp.float32, -bound, bound)
    return w, b


def _reference_forward(h, m_logits, x, y, loss_xy, params, *,
                       lambda1, lambda2, subset_size):
    w1, b1, w2, b2, w3, b3 = params
    N = x.shape[0]
    h_rep = jnp.broadcast_to(jnp.mean(h, axis=0, keepdims=True), (N, h.shape[1]))
    inp = jnp.concatenate([h_rep, x, y, m_logits], axis=1)
    a1 = _leaky_relu(inp @ w1 + b1)
    a2 = _leaky_relu(a1 @ w2 + b2)
    pi = jax.nn.sigmoid(a2 @ w3 + b3).reshape(N)
    p = jax.nn.softmax(pi)
    ent = -jnp.sum(p * jnp.log(p))
    obj = (jnp.dot(pi, loss_xy)
           + lambda1 * jnp.abs(jnp.sum(pi) - subset_size)
           - lambda2 * ent)
    return obj, pi


if __name__ == "__main__":
    # Small, self-consistent shapes.  data_len is a multiple of 128 so the
    # (1, N) pi row is stored with unmasked full-lane vst.
    B = 4               # batch of independent selector evaluations (one launch)
    data_len = 256
    data_dim = 32
    arch_dim = 16
    hidden_dim = 32
    num_classes = 8
    subset_size = 8
    lambda1, lambda2 = 1.0, 0.1
    n_h = 4             # rows of h; only h.mean(dim=0) is used

    key = jax.random.PRNGKey(0)
    k_h, k_x, k_y, k_m, k_l, k1, k2, k3 = jax.random.split(key, 8)

    h = jax.random.normal(k_h, (B, n_h, arch_dim), jnp.float32)
    x = jax.random.normal(k_x, (B, data_len, data_dim), jnp.float32)
    labels = jax.random.randint(k_y, (B, data_len), 0, num_classes)
    y = jax.nn.one_hot(labels, num_classes, dtype=jnp.float32)
    m_logits = jax.random.normal(k_m, (B, data_len, num_classes), jnp.float32)
    loss_xy = jax.random.uniform(k_l, (B, data_len), jnp.float32)

    d_in = arch_dim + data_dim + 2 * num_classes
    w1, b1 = _init_linear(k1, d_in, hidden_dim)
    w2, b2 = _init_linear(k2, hidden_dim, arch_dim)
    w3, b3 = _init_linear(k3, arch_dim, 1)
    params = (w1, b1, w2, b2, w3, b3)

    # ---- batched call: B instances, bf16 MXU operands (default) ----
    obj_b, pi_b, topk_b = soft_selector_forward_batched(
        h, m_logits, x, y, loss_xy, params,
        lambda1=lambda1, lambda2=lambda2, subset_size=subset_size)
    jax.block_until_ready((obj_b, pi_b, topk_b))
    assert pi_b.shape == (B, data_len) and obj_b.shape == (B,)
    assert topk_b.shape == (B, subset_size)

    for bidx in range(B):
        obj_r, pi_r = _reference_forward(
            h[bidx], m_logits[bidx], x[bidx], y[bidx], loss_xy[bidx], params,
            lambda1=lambda1, lambda2=lambda2, subset_size=subset_size)
        # Loose tolerances account for bf16 MXU operands on layers 1/2.
        assert jnp.allclose(pi_b[bidx], pi_r, atol=2e-2, rtol=2e-2), \
            f"pi mismatch (bf16, b={bidx})"
        assert jnp.allclose(obj_b[bidx], obj_r, atol=0.5, rtol=2e-2), \
            f"obj mismatch (bf16, b={bidx})"

    # ---- single-instance call with f32 MXU operands: tight numerics ----
    obj_1, pi_1, topk_1 = soft_selector_forward(
        h[0], m_logits[0], x[0], y[0], loss_xy[0], params,
        lambda1=lambda1, lambda2=lambda2, subset_size=subset_size,
        mxu_dtype=jnp.float32)
    jax.block_until_ready((obj_1, pi_1, topk_1))
    obj_r0, pi_r0 = _reference_forward(
        h[0], m_logits[0], x[0], y[0], loss_xy[0], params,
        lambda1=lambda1, lambda2=lambda2, subset_size=subset_size)
    assert jnp.allclose(pi_1, pi_r0, atol=2e-3, rtol=2e-3), "pi mismatch (f32)"
    assert jnp.allclose(obj_1, obj_r0, atol=5e-3, rtol=2e-3), "obj mismatch (f32)"
    assert topk_1.shape == (subset_size,)

    print("KERNEL_OK")
</pallas_src>

<mosaic_0001>
module attributes {stable_mosaic.version = 11 : i64} {
  func.func @softselector_kernel(%arg0: i32, %arg1: memref<4xf32, #tpu.memory_space<smem>>, %arg2: memref<1x4x16xf32, #tpu.memory_space<vmem>>, %arg3: memref<1x256x32xbf16, #tpu.memory_space<vmem>>, %arg4: memref<1x256x16xbf16, #tpu.memory_space<vmem>>, %arg5: memref<1x1x256xf32, #tpu.memory_space<vmem>>, %arg6: memref<32x32xbf16, #tpu.memory_space<vmem>>, %arg7: memref<16x32xbf16, #tpu.memory_space<vmem>>, %arg8: memref<16x32xbf16, #tpu.memory_space<vmem>>, %arg9: memref<32x16xbf16, #tpu.memory_space<vmem>>, %arg10: memref<1x64xf32, #tpu.memory_space<vmem>>, %arg11: memref<1x1x256xf32, #tpu.memory_space<vmem>>, %arg12: memref<1x1x128xf32, #tpu.memory_space<vmem>>) attributes {dimension_semantics = [#tpu.dimension_semantics<parallel>], iteration_bounds = array<i64: 4>, scalar_prefetch = 0 : i64, scratch_operands = 0 : i64, tpu.core_type = #tpu.core_type<tc>, window_params = [{transform_indices = @transform_0, window_bounds = array<i64: 4>}, {transform_indices = @transform_1, window_bounds = array<i64: 1, 4, 16>}, {transform_indices = @transform_2, window_bounds = array<i64: 1, 256, 32>}, {transform_indices = @transform_3, window_bounds = array<i64: 1, 256, 16>}, {transform_indices = @transform_4, window_bounds = array<i64: 1, 1, 256>}, {pipeline_mode = #tpu.pipeline_mode<synchronous>, transform_indices = @transform_5, window_bounds = array<i64: 32, 32>}, {pipeline_mode = #tpu.pipeline_mode<synchronous>, transform_indices = @transform_6, window_bounds = array<i64: 16, 32>}, {pipeline_mode = #tpu.pipeline_mode<synchronous>, transform_indices = @transform_7, window_bounds = array<i64: 16, 32>}, {pipeline_mode = #tpu.pipeline_mode<synchronous>, transform_indices = @transform_8, window_bounds = array<i64: 32, 16>}, {pipeline_mode = #tpu.pipeline_mode<synchronous>, transform_indices = @transform_9, window_bounds = array<i64: 1, 64>}, {transform_indices = @transform_10, window_bounds = array<i64: 1, 1, 256>}, {transform_indices = @transform_11, window_bounds = array<i64: 1, 1, 128>}]} {
    %c0 = arith.constant 0 : index
    %0 = memref.load %arg1[%c0] : memref<4xf32, #tpu.memory_space<smem>>
    %c1 = arith.constant 1 : index
    %1 = memref.load %arg1[%c1] : memref<4xf32, #tpu.memory_space<smem>>
    %c2 = arith.constant 2 : index
    %2 = memref.load %arg1[%c2] : memref<4xf32, #tpu.memory_space<smem>>
    %c3 = arith.constant 3 : index
    %3 = memref.load %arg1[%c3] : memref<4xf32, #tpu.memory_space<smem>>
    %c0_0 = arith.constant 0 : index
    %c0_1 = arith.constant 0 : index
    %4 = vector.load %arg10[%c0_0, %c0_1] : memref<1x64xf32, #tpu.memory_space<vmem>>, vector<1x64xf32>
    %5 = vector.extract_strided_slice %4 {offsets = [0, 0], sizes = [1, 32], strides = [1, 1]} : vector<1x64xf32> to vector<1x32xf32>
    %6 = vector.extract_strided_slice %4 {offsets = [0, 32], sizes = [1, 16], strides = [1, 1]} : vector<1x64xf32> to vector<1x16xf32>
    %7 = vector.extract_strided_slice %4 {offsets = [0, 48], sizes = [1, 16], strides = [1, 1]} : vector<1x64xf32> to vector<1x16xf32>
    %c0_2 = arith.constant 0 : index
    %c0_3 = arith.constant 0 : index
    %c0_4 = arith.constant 0 : index
    %8 = vector.load %arg2[%c0_2, %c0_3, %c0_4] : memref<1x4x16xf32, #tpu.memory_space<vmem>>, vector<1x4x16xf32>
    %9 = vector.shape_cast %8 : vector<1x4x16xf32> to vector<4x16xf32>
    %cst = arith.constant dense<0.000000e+00> : vector<16xf32>
    %10 = vector.multi_reduction <add>, %9, %cst [0] : vector<4x16xf32> to vector<16xf32>
    %11 = vector.shape_cast %10 : vector<16xf32> to vector<1x16xf32>
    %cst_5 = arith.constant 4.000000e+00 : f32
    %12 = vector.broadcast %cst_5 : f32 to vector<1x16xf32>
    %13 = arith.divf %11, %12 : vector<1x16xf32>
    %14 = arith.truncf %13 : vector<1x16xf32> to vector<1x16xbf16>
    %c0_6 = arith.constant 0 : index
    %c0_7 = arith.constant 0 : index
    %15 = vector.load %arg8[%c0_6, %c0_7] : memref<16x32xbf16, #tpu.memory_space<vmem>>, vector<16x32xbf16>
    %cst_8 = arith.constant dense<0.000000e+00> : vector<1x32xf32>
    %16 = tpu.matmul %14, %15, %cst_8 {dimension_numbers = #tpu.dot_dimension_numbers<[1], [0], [0], [1], [0, 0, 1, 1], [], []>} : vector<1x16xbf16>, vector<16x32xbf16>, vector<1x32xf32> -> vector<1x32xf32>
    %17 = arith.addf %16, %5 : vector<1x32xf32>
    %c0_9 = arith.constant 0 : index
    %c0_10 = arith.constant 0 : index
    %c0_11 = arith.constant 0 : index
    %18 = vector.load %arg3[%c0_9, %c0_10, %c0_11] : memref<1x256x32xbf16, #tpu.memory_space<vmem>>, vector<1x256x32xbf16>
    %19 = vector.shape_cast %18 : vector<1x256x32xbf16> to vector<256x32xbf16>
    %c0_12 = arith.constant 0 : index
    %c0_13 = arith.constant 0 : index
    %20 = vector.load %arg6[%c0_12, %c0_13] : memref<32x32xbf16, #tpu.memory_space<vmem>>, vector<32x32xbf16>
    %cst_14 = arith.constant dense<0.000000e+00> : vector<256x32xf32>
    %21 = tpu.matmul %19, %20, %cst_14 {dimension_numbers = #tpu.dot_dimension_numbers<[1], [0], [0], [1], [0, 0, 1, 1], [], []>} : vector<256x32xbf16>, vector<32x32xbf16>, vector<256x32xf32> -> vector<256x32xf32>
    %c0_15 = arith.constant 0 : index
    %c0_16 = arith.constant 0 : index
    %c0_17 = arith.constant 0 : index
    %22 = vector.load %arg4[%c0_15, %c0_16, %c0_17] : memref<1x256x16xbf16, #tpu.memory_space<vmem>>, vector<1x256x16xbf16>
    %23 = vector.shape_cast %22 : vector<1x256x16xbf16> to vector<256x16xbf16>
    %c0_18 = arith.constant 0 : index
    %c0_19 = arith.constant 0 : index
    %24 = vector.load %arg7[%c0_18, %c0_19] : memref<16x32xbf16, #tpu.memory_space<vmem>>, vector<16x32xbf16>
    %cst_20 = arith.constant dense<0.000000e+00> : vector<256x32xf32>
    %25 = tpu.matmul %23, %24, %cst_20 {dimension_numbers = #tpu.dot_dimension_numbers<[1], [0], [0], [1], [0, 0, 1, 1], [], []>} : vector<256x16xbf16>, vector<16x32xbf16>, vector<256x32xf32> -> vector<256x32xf32>
    %26 = arith.addf %21, %25 : vector<256x32xf32>
    %27 = vector.broadcast %17 : vector<1x32xf32> to vector<256x32xf32>
    %28 = arith.addf %26, %27 : vector<256x32xf32>
    %cst_21 = arith.constant 0.000000e+00 : f32
    %29 = vector.broadcast %cst_21 : f32 to vector<256x32xf32>
    %30 = arith.cmpf ogt, %28, %29 : vector<256x32xf32>
    %cst_22 = arith.constant 0.00999999977 : f32
    %31 = vector.broadcast %cst_22 : f32 to vector<256x32xf32>
    %32 = arith.mulf %31, %28 : vector<256x32xf32>
    %33 = arith.select %30, %28, %32 : vector<256x32xi1>, vector<256x32xf32>
    %34 = arith.truncf %33 : vector<256x32xf32> to vector<256x32xbf16>
    %c0_23 = arith.constant 0 : index
    %c0_24 = arith.constant 0 : index
    %35 = vector.load %arg9[%c0_23, %c0_24] : memref<32x16xbf16, #tpu.memory_space<vmem>>, vector<32x16xbf16>
    %cst_25 = arith.constant dense<0.000000e+00> : vector<256x16xf32>
    %36 = tpu.matmul %34, %35, %cst_25 {dimension_numbers = #tpu.dot_dimension_numbers<[1], [0], [0], [1], [0, 0, 1, 1], [], []>} : vector<256x32xbf16>, vector<32x16xbf16>, vector<256x16xf32> -> vector<256x16xf32>
    %37 = vector.broadcast %6 : vector<1x16xf32> to vector<256x16xf32>
    %38 = arith.addf %36, %37 : vector<256x16xf32>
    %cst_26 = arith.constant 0.000000e+00 : f32
    %39 = vector.broadcast %cst_26 : f32 to vector<256x16xf32>
    %40 = arith.cmpf ogt, %38, %39 : vector<256x16xf32>
    %cst_27 = arith.constant 0.00999999977 : f32
    %41 = vector.broadcast %cst_27 : f32 to vector<256x16xf32>
    %42 = arith.mulf %41, %38 : vector<256x16xf32>
    %43 = arith.select %40, %38, %42 : vector<256x16xi1>, vector<256x16xf32>
    %cst_28 = arith.constant dense<0.000000e+00> : vector<1x256xf32>
    %44 = tpu.matmul %7, %43, %cst_28 {dimension_numbers = #tpu.dot_dimension_numbers<[1], [1], [0], [0], [0, 0, 1, 0], [], []>} : vector<1x16xf32>, vector<256x16xf32>, vector<1x256xf32> -> vector<1x256xf32>
    %45 = vector.broadcast %3 : f32 to vector<1x256xf32>
    %46 = arith.addf %44, %45 : vector<1x256xf32>
    %47 = arith.negf %46 : vector<1x256xf32>
    %48 = math.exp %47 : vector<1x256xf32>
    %cst_29 = arith.constant 1.000000e+00 : f32
    %49 = vector.broadcast %cst_29 : f32 to vector<1x256xf32>
    %50 = arith.addf %49, %48 : vector<1x256xf32>
    %51 = arith.divf %49, %50 : vector<1x256xf32>
    %c0_30 = arith.constant 0 : index
    %c0_31 = arith.constant 0 : index
    %c0_32 = arith.constant 0 : index
    %52 = vector.load %arg11[%c0_30, %c0_31, %c0_32] : memref<1x1x256xf32, #tpu.memory_space<vmem>>, vector<1x1x256xf32>
    %53 = vector.shape_cast %52 : vector<1x1x256xf32> to vector<1x256xf32>
    %54 = vector.shape_cast %51 : vector<1x256xf32> to vector<1x1x256xf32>
    tpu.vector_store %arg11[%c0_30, %c0_31, %c0_32], %54 {strides = array<i32>} : memref<1x1x256xf32, #tpu.memory_space<vmem>>, vector<1x1x256xf32>,
    %c0_33 = arith.constant 0 : index
    %c0_34 = arith.constant 0 : index
    %c0_35 = arith.constant 0 : index
    %55 = vector.load %arg5[%c0_33, %c0_34, %c0_35] : memref<1x1x256xf32, #tpu.memory_space<vmem>>, vector<1x1x256xf32>
    %56 = vector.shape_cast %55 : vector<1x1x256xf32> to vector<1x256xf32>
    %57 = arith.mulf %51, %56 : vector<1x256xf32>
    %cst_36 = arith.constant dense<0.000000e+00> : vector<1xf32>
    %58 = vector.multi_reduction <add>, %57, %cst_36 [1] : vector<1x256xf32> to vector<1xf32>
    %59 = vector.shape_cast %58 : vector<1xf32> to vector<1x1xf32>
    %cst_37 = arith.constant dense<0.000000e+00> : vector<1xf32>
    %60 = vector.multi_reduction <add>, %51, %cst_37 [1] : vector<1x256xf32> to vector<1xf32>
    %61 = vector.shape_cast %60 : vector<1xf32> to vector<1x1xf32>
    %62 = vector.broadcast %2 : f32 to vector<1x1xf32>
    %63 = arith.subf %61, %62 : vector<1x1xf32>
    %64 = math.absf %63 : vector<1x1xf32>
    %cst_38 = arith.constant dense<0xFF800000> : vector<1xf32>
    %65 = vector.multi_reduction <maximumf>, %51, %cst_38 [1] : vector<1x256xf32> to vector<1xf32>
    %66 = vector.shape_cast %65 : vector<1xf32> to vector<1x1xf32>
    %67 = vector.broadcast %66 : vector<1x1xf32> to vector<1x256xf32>
    %68 = arith.subf %51, %67 : vector<1x256xf32>
    %69 = math.exp %68 : vector<1x256xf32>
    %cst_39 = arith.constant dense<0.000000e+00> : vector<1xf32>
    %70 = vector.multi_reduction <add>, %69, %cst_39 [1] : vector<1x256xf32> to vector<1xf32>
    %71 = vector.shape_cast %70 : vector<1xf32> to vector<1x1xf32>
    %72 = math.log %71 : vector<1x1xf32>
    %73 = arith.addf %66, %72 : vector<1x1xf32>
    %74 = arith.mulf %69, %51 : vector<1x256xf32>
    %cst_40 = arith.constant dense<0.000000e+00> : vector<1xf32>
    %75 = vector.multi_reduction <add>, %74, %cst_40 [1] : vector<1x256xf32> to vector<1xf32>
    %76 = vector.shape_cast %75 : vector<1xf32> to vector<1x1xf32>
    %77 = arith.divf %76, %71 : vector<1x1xf32>
    %78 = arith.subf %73, %77 : vector<1x1xf32>
    %79 = vector.broadcast %0 : f32 to vector<1x1xf32>
    %80 = arith.mulf %79, %64 : vector<1x1xf32>
    %81 = arith.addf %59, %80 : vector<1x1xf32>
    %82 = vector.broadcast %1 : f32 to vector<1x1xf32>
    %83 = arith.mulf %82, %78 : vector<1x1xf32>
    %84 = arith.subf %81, %83 : vector<1x1xf32>
    %85 = vector.shape_cast %84 : vector<1x1xf32> to vector<1x1xf32>
    %86 = vector.broadcast %85 : vector<1x1xf32> to vector<1x128xf32>
    %c0_41 = arith.constant 0 : index
    %c0_42 = arith.constant 0 : index
    %c0_43 = arith.constant 0 : index
    %87 = vector.load %arg12[%c0_41, %c0_42, %c0_43] : memref<1x1x128xf32, #tpu.memory_space<vmem>>, vector<1x1x128xf32>
    %88 = vector.shape_cast %87 : vector<1x1x128xf32> to vector<1x128xf32>
    %89 = vector.shape_cast %86 : vector<1x128xf32> to vector<1x1x128xf32>
    tpu.vector_store %arg12[%c0_41, %c0_42, %c0_43], %89 {strides = array<i32>} : memref<1x1x128xf32, #tpu.memory_space<vmem>>, vector<1x1x128xf32>,
    return
  }
  func.func @transform_0(%arg0: i32) -> i32 {
    %c0_i32 = arith.constant 0 : i32
    %c0_i32_0 = arith.constant 0 : i32
    return %c0_i32 : i32
  }
  func.func @transform_1(%arg0: i32) -> (i32, i32, i32) {
    %c0_i32 = arith.constant 0 : i32
    %c0_i32_0 = arith.constant 0 : i32
    %c0_i32_1 = arith.constant 0 : i32
    return %arg0, %c0_i32, %c0_i32_0 : i32, i32, i32
  }
  func.func @transform_2(%arg0: i32) -> (i32, i32, i32) {
    %c0_i32 = arith.constant 0 : i32
    %c0_i32_0 = arith.constant 0 : i32
    %c0_i32_1 = arith.constant 0 : i32
    return %arg0, %c0_i32, %c0_i32_0 : i32, i32, i32
  }
  func.func @transform_3(%arg0: i32) -> (i32, i32, i32) {
    %c0_i32 = arith.constant 0 : i32
    %c0_i32_0 = arith.constant 0 : i32
    %c0_i32_1 = arith.constant 0 : i32
    return %arg0, %c0_i32, %c0_i32_0 : i32, i32, i32
  }
  func.func @transform_4(%arg0: i32) -> (i32, i32, i32) {
    %c0_i32 = arith.constant 0 : i32
    %c0_i32_0 = arith.constant 0 : i32
    %c0_i32_1 = arith.constant 0 : i32
    return %arg0, %c0_i32, %c0_i32_0 : i32, i32, i32
  }
  func.func @transform_5(%arg0: i32) -> (i32, i32) {
    %c0_i32 = arith.constant 0 : i32
    %c0_i32_0 = arith.constant 0 : i32
    %c0_i32_1 = arith.constant 0 : i32
    return %c0_i32, %c0_i32_0 : i32, i32
  }
  func.func @transform_6(%arg0: i32) -> (i32, i32) {
    %c0_i32 = arith.constant 0 : i32
    %c0_i32_0 = arith.constant 0 : i32
    %c0_i32_1 = arith.constant 0 : i32
    return %c0_i32, %c0_i32_0 : i32, i32
  }
  func.func @transform_7(%arg0: i32) -> (i32, i32) {
    %c0_i32 = arith.constant 0 : i32
    %c0_i32_0 = arith.constant 0 : i32
    %c0_i32_1 = arith.constant 0 : i32
    return %c0_i32, %c0_i32_0 : i32, i32
  }
  func.func @transform_8(%arg0: i32) -> (i32, i32) {
    %c0_i32 = arith.constant 0 : i32
    %c0_i32_0 = arith.constant 0 : i32
    %c0_i32_1 = arith.constant 0 : i32
    return %c0_i32, %c0_i32_0 : i32, i32
  }
  func.func @transform_9(%arg0: i32) -> (i32, i32) {
    %c0_i32 = arith.constant 0 : i32
    %c0_i32_0 = arith.constant 0 : i32
    %c0_i32_1 = arith.constant 0 : i32
    return %c0_i32, %c0_i32_0 : i32, i32
  }
  func.func @transform_10(%arg0: i32) -> (i32, i32, i32) {
    %c0_i32 = arith.constant 0 : i32
    %c0_i32_0 = arith.constant 0 : i32
    %c0_i32_1 = arith.constant 0 : i32
    return %arg0, %c0_i32, %c0_i32_0 : i32, i32, i32
  }
  func.func @transform_11(%arg0: i32) -> (i32, i32, i32) {
    %c0_i32 = arith.constant 0 : i32
    %c0_i32_0 = arith.constant 0 : i32
    %c0_i32_1 = arith.constant 0 : i32
    return %arg0, %c0_i32, %c0_i32_0 : i32, i32, i32
  }
}

</mosaic_0001>

<llo_original>
// kernel: soft_selector_forward_batched.1
$region0: #{soft_selector_forward_batched.1}
  #allocation0 [shape = 'u32[]', space=smem, size = 0x4, offset = 0x4, fixed_abs, tag = 'smem constant byte address 0x4 - core index']
  #allocation1 [shape = 'u32[144,128]{1,0:T(1,128)}', space=vmem, size = 0x12000, scoped, tag = 'internal scratch']
  %s0 = inlined_call_operand.vmem [shape: f32[4], index: 0, kind: input, shape index: {}]
  %s1 = inlined_call_operand.vmem [shape: f32[4,4,16], index: 1, kind: input, shape index: {}]
  %s2 = inlined_call_operand.vmem [shape: bf16[4,256,32], index: 2, kind: input, shape index: {}]
  %s3 = inlined_call_operand.vmem [shape: bf16[4,256,16], index: 3, kind: input, shape index: {}]
  %s4 = inlined_call_operand.vmem [shape: f32[4,1,256], index: 4, kind: input, shape index: {}]
  %s5 = inlined_call_operand.vmem [shape: bf16[32,32], index: 5, kind: input, shape index: {}]
  %s6 = inlined_call_operand.vmem [shape: bf16[16,32], index: 6, kind: input, shape index: {}]
  %s7 = inlined_call_operand.vmem [shape: bf16[16,32], index: 7, kind: input, shape index: {}]
  %s8 = inlined_call_operand.vmem [shape: bf16[32,16], index: 8, kind: input, shape index: {}]
  %s9 = inlined_call_operand.vmem [shape: f32[1,64], index: 9, kind: input, shape index: {}]
  %s10 = inlined_call_operand.vmem [shape: f32[4,1,256], index: 10, kind: output, shape index: {0}]
  %s11 = inlined_call_operand.vmem [shape: f32[4,1,128], index: 11, kind: output, shape index: {1}]
  %12 = xla_tuple %s10, %s11
  %s13 = sld [smem:[#allocation0]]
  $region85: #{soft_selector_forward_batched.1} parent=0
    _
  %s15 = ssub.s32 1, %s13
  %s16 = scalar_select 0, %s15, %s13
  $region1: #{soft_selector_forward_batched.1} parent=0
    #allocation2 [shape = 'u8[512]{0}', space=smem, size = 0x200, scoped, tag = 'input window, operand 0, single buffered']
    #allocation3 [shape = 's32[2]{0}', space=sflag, size = 0x8, scoped, tag = 'scoped memory for soft_selector_forward_batched.1']
    %17 = vsyncpa [#allocation3], 0
    loop: start=0, step=1, limit=6
    $region2: #{soft_selector_forward_batched.1} parent=1 // loop_pre_header
      _
    $region3: #{soft_selector_forward_batched.1} parent=1 // loop_header
      %s19 = sphi 0, %s23
      %p20 = scmp.ge.s32.totalorder %s19, 6
      %s27 = sphi 0, %s27
      %s29 = sphi 0, %s27
      %s30 = sphi 0, %s29
      %s44 = sphi 0, %s30
      %s50 = sphi 0, %s52
      %s53 = sphi 0, %s50
      %s54 = sphi 0, %s53
      %s70 = sphi 0, %s54
      %s76 = sphi 0, %s78
      %s79 = sphi 0, %s76
      %s80 = sphi 0, %s79
      %s96 = sphi 0, %s80
      %s102 = sphi 0, %s104
      %s105 = sphi 0, %s102
      %s106 = sphi 0, %s105
      %s122 = sphi 0, %s106
      %s128 = sphi 0, %s130
      %s131 = sphi 0, %s128
      %s132 = sphi 0, %s131
      %s148 = sphi 0, %s132
      %s152 = sphi 0, %s152
      %s154 = sphi 0, %s152
      %s155 = sphi 0, %s154
      %s169 = sphi 0, %s155
      %s173 = sphi 0, %s173
      %s175 = sphi 0, %s173
      %s176 = sphi 0, %s175
      %s190 = sphi 0, %s176
      %s194 = sphi 0, %s194
      %s196 = sphi 0, %s194
      %s197 = sphi 0, %s196
      %s211 = sphi 0, %s197
      %s215 = sphi 0, %s215
      %s217 = sphi 0, %s215
      %s218 = sphi 0, %s217
      %s232 = sphi 0, %s218
      %s236 = sphi 0, %s236
      %s238 = sphi 0, %s236
      %s239 = sphi 0, %s238
      %s253 = sphi 0, %s239
      %s259 = sphi 0, %s261
      %s262 = sphi 0, %s259
      %s263 = sphi 0, %s262
      %s279 = sphi 0, %s263
      %s285 = sphi 0, %s287
      %s288 = sphi 0, %s285
      %s289 = sphi 0, %s288
      %s305 = sphi 0, %s289
    $region4: #{soft_selector_forward_batched.1} parent=1 // loop_header_branch
      %22 = sbr.rel (%p20) target = $region8
    $region5: #{soft_selector_forward_batched.1} parent=1 // loop_body
      %s24 = ssub.s32 %s19, 1
      %s25 = ssub.s32 %s19, 2
      %s26 = sadd.s32 %s19, 1
      %s28 = sadd.s32 %s27, 1
      %p31 = scmp.eq.s32.totalorder %s19, 3
      %p32 = scmp.ne.s32.totalorder %s27, %s29
      %p33 = scmp.eq.s32.totalorder %s19, 0
      %p34 = por %p32, %p33
      %p35 = scmp.ne.s32.totalorder %s27, %s29
      %p36 = scmp.eq.s32.totalorder %s24, 3
      %p37 = por %p35, %p36
      %p38 = scmp.ne.s32.totalorder %s29, %s30
      %p39 = scmp.eq.s32.totalorder %s24, 0
      %p40 = por %p38, %p39
      %p41 = scmp.ne.s32.totalorder %s29, %s30
      %p42 = scmp.eq.s32.totalorder %s25, 3
      %p43 = por %p41, %p42
      %p45 = scmp.ne.s32.totalorder %s30, %s44
      %p46 = scmp.eq.s32.totalorder %s25, 0
      %p47 = por %p45, %p46
      %s48 = ssub.s32 %s19, %s26
      %p49 = scmp.eq.s32.totalorder %s48, 0
      %s51 = sadd.s32 %s50, 1
      %s52 = scalar_select %p49, %s50, %s51
      %p55 = pneg %p49
      %p56 = scmp.eq.s32.totalorder %s19, 3
      %p57 = por %p55, %p56
      %p58 = scmp.ne.s32.totalorder %s50, %s53
      %p59 = scmp.eq.s32.totalorder %s19, 0
      %p60 = por %p58, %p59
      %p61 = scmp.ne.s32.totalorder %s50, %s53
      %p62 = scmp.eq.s32.totalorder %s24, 3
      %p63 = por %p61, %p62
      %p64 = scmp.ne.s32.totalorder %s53, %s54
      %p65 = scmp.eq.s32.totalorder %s24, 0
      %p66 = por %p64, %p65
      %p67 = scmp.ne.s32.totalorder %s53, %s54
      %p68 = scmp.eq.s32.totalorder %s25, 3
      %p69 = por %p67, %p68
      %p71 = scmp.ne.s32.totalorder %s54, %s70
      %p72 = scmp.eq.s32.totalorder %s25, 0
      %p73 = por %p71, %p72
      %s74 = ssub.s32 %s19, %s26
      %p75 = scmp.eq.s32.totalorder %s74, 0
      %s77 = sadd.s32 %s76, 1
      %s78 = scalar_select %p75, %s76, %s77
      %p81 = pneg %p75
      %p82 = scmp.eq.s32.totalorder %s19, 3
      %p83 = por %p81, %p82
      %p84 = scmp.ne.s32.totalorder %s76, %s79
      %p85 = scmp.eq.s32.totalorder %s19, 0
      %p86 = por %p84, %p85
      %p87 = scmp.ne.s32.totalorder %s76, %s79
      %p88 = scmp.eq.s32.totalorder %s24, 3
      %p89 = por %p87, %p88
      %p90 = scmp.ne.s32.totalorder %s79, %s80
      %p91 = scmp.eq.s32.totalorder %s24, 0
      %p92 = por %p90, %p91
      %p93 = scmp.ne.s32.totalorder %s79, %s80
      %p94 = scmp.eq.s32.totalorder %s25, 3
      %p95 = por %p93, %p94
      %p97 = scmp.ne.s32.totalorder %s80, %s96
      %p98 = scmp.eq.s32.totalorder %s25, 0
      %p99 = por %p97, %p98
      %s100 = ssub.s32 %s19, %s26
      %p101 = scmp.eq.s32.totalorder %s100, 0
      %s103 = sadd.s32 %s102, 1
      %s104 = scalar_select %p101, %s102, %s103
      %p107 = pneg %p101
      %p108 = scmp.eq.s32.totalorder %s19, 3
      %p109 = por %p107, %p108
      %p110 = scmp.ne.s32.totalorder %s102, %s105
      %p111 = scmp.eq.s32.totalorder %s19, 0
      %p112 = por %p110, %p111
      %p113 = scmp.ne.s32.totalorder %s102, %s105
      %p114 = scmp.eq.s32.totalorder %s24, 3
      %p115 = por %p113, %p114
      %p116 = scmp.ne.s32.totalorder %s105, %s106
      %p117 = scmp.eq.s32.totalorder %s24, 0
      %p118 = por %p116, %p117
      %p119 = scmp.ne.s32.totalorder %s105, %s106
      %p120 = scmp.eq.s32.totalorder %s25, 3
      %p121 = por %p119, %p120
      %p123 = scmp.ne.s32.totalorder %s106, %s122
      %p124 = scmp.eq.s32.totalorder %s25, 0
      %p125 = por %p123, %p124
      %s126 = ssub.s32 %s19, %s26
      %p127 = scmp.eq.s32.totalorder %s126, 0
      %s129 = sadd.s32 %s128, 1
      %s130 = scalar_select %p127, %s128, %s129
      %p133 = pneg %p127
      %p134 = scmp.eq.s32.totalorder %s19, 3
      %p135 = por %p133, %p134
      %p136 = scmp.ne.s32.totalorder %s128, %s131
      %p137 = scmp.eq.s32.totalorder %s19, 0
      %p138 = por %p136, %p137
      %p139 = scmp.ne.s32.totalorder %s128, %s131
      %p140 = scmp.eq.s32.totalorder %s24, 3
      %p141 = por %p139, %p140
      %p142 = scmp.ne.s32.totalorder %s131, %s132
      %p143 = scmp.eq.s32.totalorder %s24, 0
      %p144 = por %p142, %p143
      %p145 = scmp.ne.s32.totalorder %s131, %s132
      %p146 = scmp.eq.s32.totalorder %s25, 3
      %p147 = por %p145, %p146
      %p149 = scmp.ne.s32.totalorder %s132, %s148
      %p150 = scmp.eq.s32.totalorder %s25, 0
      %p151 = por %p149, %p150
      %s153 = sadd.s32 %s152, 1
      %p156 = scmp.eq.s32.totalorder %s19, 3
      %p157 = scmp.ne.s32.totalorder %s152, %s154
      %p158 = scmp.eq.s32.totalorder %s19, 0
      %p159 = por %p157, %p158
      %p160 = scmp.ne.s32.totalorder %s152, %s154
      %p161 = scmp.eq.s32.totalorder %s24, 3
      %p162 = por %p160, %p161
      %p163 = scmp.ne.s32.totalorder %s154, %s155
      %p164 = scmp.eq.s32.totalorder %s24, 0
      %p165 = por %p163, %p164
      %p166 = scmp.ne.s32.totalorder %s154, %s155
      %p167 = scmp.eq.s32.totalorder %s25, 3
      %p168 = por %p166, %p167
      %p170 = scmp.ne.s32.totalorder %s155, %s169
      %p171 = scmp.eq.s32.totalorder %s25, 0
      %p172 = por %p170, %p171
      %s174 = sadd.s32 %s173, 1
      %p177 = scmp.eq.s32.totalorder %s19, 3
      %p178 = scmp.ne.s32.totalorder %s173, %s175
      %p179 = scmp.eq.s32.totalorder %s19, 0
      %p180 = por %p178, %p179
      %p181 = scmp.ne.s32.totalorder %s173, %s175
      %p182 = scmp.eq.s32.totalorder %s24, 3
      %p183 = por %p181, %p182
      %p184 = scmp.ne.s32.totalorder %s175, %s176
      %p185 = scmp.eq.s32.totalorder %s24, 0
      %p186 = por %p184, %p185
      %p187 = scmp.ne.s32.totalorder %s175, %s176
      %p188 = scmp.eq.s32.totalorder %s25, 3
      %p189 = por %p187, %p188
      %p191 = scmp.ne.s32.totalorder %s176, %s190
      %p192 = scmp.eq.s32.totalorder %s25, 0
      %p193 = por %p191, %p192
      %s195 = sadd.s32 %s194, 1
      %p198 = scmp.eq.s32.totalorder %s19, 3
      %p199 = scmp.ne.s32.totalorder %s194, %s196
      %p200 = scmp.eq.s32.totalorder %s19, 0
      %p201 = por %p199, %p200
      %p202 = scmp.ne.s32.totalorder %s194, %s196
      %p203 = scmp.eq.s32.totalorder %s24, 3
      %p204 = por %p202, %p203
      %p205 = scmp.ne.s32.totalorder %s196, %s197
      %p206 = scmp.eq.s32.totalorder %s24, 0
      %p207 = por %p205, %p206
      %p208 = scmp.ne.s32.totalorder %s196, %s197
      %p209 = scmp.eq.s32.totalorder %s25, 3
      %p210 = por %p208, %p209
      %p212 = scmp.ne.s32.totalorder %s197, %s211
      %p213 = scmp.eq.s32.totalorder %s25, 0
      %p214 = por %p212, %p213
      %s216 = sadd.s32 %s215, 1
      %p219 = scmp.eq.s32.totalorder %s19, 3
      %p220 = scmp.ne.s32.totalorder %s215, %s217
      %p221 = scmp.eq.s32.totalorder %s19, 0
      %p222 = por %p220, %p221
      %p223 = scmp.ne.s32.totalorder %s215, %s217
      %p224 = scmp.eq.s32.totalorder %s24, 3
      %p225 = por %p223, %p224
      %p226 = scmp.ne.s32.totalorder %s217, %s218
      %p227 = scmp.eq.s32.totalorder %s24, 0
      %p228 = por %p226, %p227
      %p229 = scmp.ne.s32.totalorder %s217, %s218
      %p230 = scmp.eq.s32.totalorder %s25, 3
      %p231 = por %p229, %p230
      %p233 = scmp.ne.s32.totalorder %s218, %s232
      %p234 = scmp.eq.s32.totalorder %s25, 0
      %p235 = por %p233, %p234
      %s237 = sadd.s32 %s236, 1
      %p240 = scmp.eq.s32.totalorder %s19, 3
      %p241 = scmp.ne.s32.totalorder %s236, %s238
      %p242 = scmp.eq.s32.totalorder %s19, 0
      %p243 = por %p241, %p242
      %p244 = scmp.ne.s32.totalorder %s236, %s238
      %p245 = scmp.eq.s32.totalorder %s24, 3
      %p246 = por %p244, %p245
      %p247 = scmp.ne.s32.totalorder %s238, %s239
      %p248 = scmp.eq.s32.totalorder %s24, 0
      %p249 = por %p247, %p248
      %p250 = scmp.ne.s32.totalorder %s238, %s239
      %p251 = scmp.eq.s32.totalorder %s25, 3
      %p252 = por %p250, %p251
      %p254 = scmp.ne.s32.totalorder %s239, %s253
      %p255 = scmp.eq.s32.totalorder %s25, 0
      %p256 = por %p254, %p255
      %s257 = ssub.s32 %s19, %s26
      %p258 = scmp.eq.s32.totalorder %s257, 0
      %s260 = sadd.s32 %s259, 1
      %s261 = scalar_select %p258, %s259, %s260
      %p264 = pneg %p258
      %p265 = scmp.eq.s32.totalorder %s19, 3
      %p266 = por %p264, %p265
      %p267 = scmp.ne.s32.totalorder %s259, %s262
      %p268 = scmp.eq.s32.totalorder %s19, 0
      %p269 = por %p267, %p268
      %p270 = scmp.ne.s32.totalorder %s259, %s262
      %p271 = scmp.eq.s32.totalorder %s24, 3
      %p272 = por %p270, %p271
      %p273 = scmp.ne.s32.totalorder %s262, %s263
      %p274 = scmp.eq.s32.totalorder %s24, 0
      %p275 = por %p273, %p274
      %p276 = scmp.ne.s32.totalorder %s262, %s263
      %p277 = scmp.eq.s32.totalorder %s25, 3
      %p278 = por %p276, %p277
      %p280 = scmp.ne.s32.totalorder %s263, %s279
      %p281 = scmp.eq.s32.totalorder %s25, 0
      %p282 = por %p280, %p281
      %s283 = ssub.s32 %s19, %s26
      %p284 = scmp.eq.s32.totalorder %s283, 0
      %s286 = sadd.s32 %s285, 1
      %s287 = scalar_select %p284, %s285, %s286
      %p290 = pneg %p284
      %p291 = scmp.eq.s32.totalorder %s19, 3
      %p292 = por %p290, %p291
      %p293 = scmp.ne.s32.totalorder %s285, %s288
      %p294 = scmp.eq.s32.totalorder %s19, 0
      %p295 = por %p293, %p294
      %p296 = scmp.ne.s32.totalorder %s285, %s288
      %p297 = scmp.eq.s32.totalorder %s24, 3
      %p298 = por %p296, %p297
      %p299 = scmp.ne.s32.totalorder %s288, %s289
      %p300 = scmp.eq.s32.totalorder %s24, 0
      %p301 = por %p299, %p300
      %p302 = scmp.ne.s32.totalorder %s288, %s289
      %p303 = scmp.eq.s32.totalorder %s25, 3
      %p304 = por %p302, %p303
      %p306 = scmp.ne.s32.totalorder %s289, %s305
      %p307 = scmp.eq.s32.totalorder %s25, 0
      %p308 = por %p306, %p307
      %p309 = scmp.le.s32.totalorder 1, %s19
      %p310 = scmp.lt.s32.totalorder %s19, 5
      %p311 = pnand %p309, %p310
      %p312 = pneg %p311
      // Predicated region
      $region9: #{soft_selector_forward_batched.1} parent=5 // pred_check
        _
      $region10: #{soft_selector_forward_batched.1} parent=5 // pred_check_branch
        %314 = sbr.rel (%p311) target = $region12
      $region11: #{soft_selector_forward_batched.1} parent=5 // pred_region
        %s315 = ssub.s32 %s19, 1
        // Predicated region
        $region13: #{soft_selector_forward_batched.1} parent=11 // pred_check
          %p316 = pneg %p40
        $region14: #{soft_selector_forward_batched.1} parent=11 // pred_check_branch
          %318 = sbr.rel (%p316) target = $region16
        $region15: #{soft_selector_forward_batched.1} parent=11 // pred_region
          %s320 = ssub.s32 16, 16
          %321 = vsyncadd [#allocation3], %s320
          %s323 = sshll.u32 %s0, 4
          %s324 = int_to_ptr.vmem [resolvable:$true] %s323
          %326 = dma.vmem_to_smem %s324, 16, [#allocation2], [#allocation3]
        $region16: #{soft_selector_forward_batched.1} parent=11 // pred_fallthru
          _
        // Predicated region
        $region17: #{soft_selector_forward_batched.1} parent=11 // pred_check
          %p327 = pneg %p165
        $region18: #{soft_selector_forward_batched.1} parent=11 // pred_check_branch
          %329 = sbr.rel (%p327) target = $region20
        $region19: #{soft_selector_forward_batched.1} parent=11 // pred_region
          _
        $region20: #{soft_selector_forward_batched.1} parent=11 // pred_fallthru
          _
        // Predicated region
        $region21: #{soft_selector_forward_batched.1} parent=11 // pred_check
          %p330 = pneg %p186
        $region22: #{soft_selector_forward_batched.1} parent=11 // pred_check_branch
          %332 = sbr.rel (%p330) target = $region24
        $region23: #{soft_selector_forward_batched.1} parent=11 // pred_region
          _
        $region24: #{soft_selector_forward_batched.1} parent=11 // pred_fallthru
          _
        // Predicated region
        $region25: #{soft_selector_forward_batched.1} parent=11 // pred_check
          %p333 = pneg %p207
        $region26: #{soft_selector_forward_batched.1} parent=11 // pred_check_branch
          %335 = sbr.rel (%p333) target = $region28
        $region27: #{soft_selector_forward_batched.1} parent=11 // pred_region
          _
        $region28: #{soft_selector_forward_batched.1} parent=11 // pred_fallthru
          _
        // Predicated region
        $region29: #{soft_selector_forward_batched.1} parent=11 // pred_check
          %p336 = pneg %p228
        $region30: #{soft_selector_forward_batched.1} parent=11 // pred_check_branch
          %338 = sbr.rel (%p336) target = $region32
        $region31: #{soft_selector_forward_batched.1} parent=11 // pred_region
          _
        $region32: #{soft_selector_forward_batched.1} parent=11 // pred_fallthru
          _
        // Predicated region
        $region33: #{soft_selector_forward_batched.1} parent=11 // pred_check
          %p339 = pneg %p249
        $region34: #{soft_selector_forward_batched.1} parent=11 // pred_check_branch
          %341 = sbr.rel (%p339) target = $region36
        $region35: #{soft_selector_forward_batched.1} parent=11 // pred_region
          _
        $region36: #{soft_selector_forward_batched.1} parent=11 // pred_fallthru
          _
      $region12: #{soft_selector_forward_batched.1} parent=5 // pred_fallthru
        _
      %p342 = scmp.lt.s32.totalorder %s19, 4
      // Predicated region
      $region37: #{soft_selector_forward_batched.1} parent=5 // pred_check
        %p343 = pneg %p342
      $region38: #{soft_selector_forward_batched.1} parent=5 // pred_check_branch
        %345 = sbr.rel (%p343) target = $region40
      $region39: #{soft_selector_forward_batched.1} parent=5 // pred_region
        // Predicated region
        $region41: #{soft_selector_forward_batched.1} parent=39 // pred_check
          %p346 = pneg %p60
        $region42: #{soft_selector_forward_batched.1} parent=39 // pred_check_branch
          %348 = sbr.rel (%p346) target = $region44
        $region43: #{soft_selector_forward_batched.1} parent=39 // pred_region
          %p349 = scmp.lt.s32.totalorder %s19, 3
          %s350 = scalar_select %p349, %s19, 3
          %s351 = smul.addr %s350, 4
          %s352 = scalar_lea.vmem %s1, %s351
        $region44: #{soft_selector_forward_batched.1} parent=39 // pred_fallthru
          _
        // Predicated region
        $region45: #{soft_selector_forward_batched.1} parent=39 // pred_check
          %p353 = pneg %p86
        $region46: #{soft_selector_forward_batched.1} parent=39 // pred_check_branch
          %355 = sbr.rel (%p353) target = $region48
        $region47: #{soft_selector_forward_batched.1} parent=39 // pred_region
          %p356 = scmp.lt.s32.totalorder %s19, 3
          %s357 = scalar_select %p356, %s19, 3
          %s358 = smul.addr %s357, 32
          %s359 = smul.addr %s358, 4
          %s360 = scalar_lea.vmem %s2, %s359
        $region48: #{soft_selector_forward_batched.1} parent=39 // pred_fallthru
          _
        // Predicated region
        $region49: #{soft_selector_forward_batched.1} parent=39 // pred_check
          %p361 = pneg %p112
        $region50: #{soft_selector_forward_batched.1} parent=39 // pred_check_branch
          %363 = sbr.rel (%p361) target = $region52
        $region51: #{soft_selector_forward_batched.1} parent=39 // pred_region
          %p364 = scmp.lt.s32.totalorder %s19, 3
          %s365 = scalar_select %p364, %s19, 3
          %s366 = smul.addr %s365, 32
          %s367 = smul.addr %s366, 4
          %s368 = scalar_lea.vmem %s3, %s367
        $region52: #{soft_selector_forward_batched.1} parent=39 // pred_fallthru
          _
        // Predicated region
        $region53: #{soft_selector_forward_batched.1} parent=39 // pred_check
          %p369 = pneg %p138
        $region54: #{soft_selector_forward_batched.1} parent=39 // pred_check_branch
          %371 = sbr.rel (%p369) target = $region56
        $region55: #{soft_selector_forward_batched.1} parent=39 // pred_region
          %p372 = scmp.lt.s32.totalorder %s19, 3
          %s373 = scalar_select %p372, %s19, 3
          %s374 = smul.addr %s373, 2
          %s375 = scalar_lea.vmem %s4, %s374
        $region56: #{soft_selector_forward_batched.1} parent=39 // pred_fallthru
          _
      $region40: #{soft_selector_forward_batched.1} parent=5 // pred_fallthru
        _
      %p376 = scmp.le.s32.totalorder 1, %s19
      %p377 = scmp.lt.s32.totalorder %s19, 5
      %p378 = pnand %p376, %p377
      %p379 = pneg %p378
      // Predicated region
      $region57: #{soft_selector_forward_batched.1} parent=5 // pred_check
        _
      $region58: #{soft_selector_forward_batched.1} parent=5 // pred_check_branch
        %381 = sbr.rel (%p378) target = $region60
      $region59: #{soft_selector_forward_batched.1} parent=5 // pred_region
        %s382 = ssub.s32 %s19, 1
        // Predicated region
        $region61: #{soft_selector_forward_batched.1} parent=59 // pred_check
          %p383 = pneg %p40
        $region62: #{soft_selector_forward_batched.1} parent=59 // pred_check_branch
          %385 = sbr.rel (%p383) target = $region64
        $region63: #{soft_selector_forward_batched.1} parent=59 // pred_region
          %386 = dma.done [#allocation3], 16
        $region64: #{soft_selector_forward_batched.1} parent=59 // pred_fallthru
          _
        %387 = sfence
        %p388 = pneg %p40
        %p389 = pneg %p37
        %p390 = scmp.lt.s32.totalorder %s24, 3
        %s391 = scalar_select %p390, %s24, 3
        %s392 = smul.addr %s391, 4
        %s393 = scalar_lea.vmem %s1, %s392
        %p394 = pneg %p66
        %p395 = pneg %p63
        %p396 = scmp.lt.s32.totalorder %s24, 3
        %s397 = scalar_select %p396, %s24, 3
        %s398 = smul.addr %s397, 32
        %s399 = smul.addr %s398, 4
        %s400 = scalar_lea.vmem %s2, %s399
        %p401 = pneg %p92
        %p402 = pneg %p89
        %p403 = scmp.lt.s32.totalorder %s24, 3
        %s404 = scalar_select %p403, %s24, 3
        %s405 = smul.addr %s404, 32
        %s406 = smul.addr %s405, 4
        %s407 = scalar_lea.vmem %s3, %s406
        %p408 = pneg %p118
        %p409 = pneg %p115
        %p410 = scmp.lt.s32.totalorder %s24, 3
        %s411 = scalar_select %p410, %s24, 3
        %s412 = smul.addr %s411, 2
        %s413 = scalar_lea.vmem %s4, %s412
        %p414 = pneg %p144
        %p415 = pneg %p141
        %p416 = pneg %p165
        %p417 = pneg %p162
        %p418 = pneg %p186
        %p419 = pneg %p183
        %p420 = pneg %p207
        %p421 = pneg %p204
        %p422 = pneg %p228
        %p423 = pneg %p225
        %p424 = pneg %p249
        %p425 = pneg %p246
        %p426 = pneg %p275
        %p427 = pneg %p272
        %p428 = scmp.lt.s32.totalorder %s24, 3
        %s429 = scalar_select %p428, %s24, 3
        %s430 = smul.addr %s429, 2
        %s431 = scalar_lea.vmem %s10, %s430
        %p432 = pneg %p301
        %p433 = pneg %p298
        %p434 = scmp.lt.s32.totalorder %s24, 3
        %s435 = scalar_select %p434, %s24, 3
        %s436 = scalar_lea.vmem %s11, %s435
        %p437 = scmp.lt.s32.totalorder %s24, 3
        %s438 = scalar_select %p437, %s24, 3
        %s439 = smul.addr %s438, 4
        %s440 = scalar_lea.vmem %s1, %s439
        %p441 = scmp.lt.s32.totalorder %s24, 3
        %s442 = scalar_select %p441, %s24, 3
        %s443 = smul.addr %s442, 32
        %s444 = smul.addr %s443, 4
        %s445 = scalar_lea.vmem %s2, %s444
        %p446 = scmp.lt.s32.totalorder %s24, 3
        %s447 = scalar_select %p446, %s24, 3
        %s448 = smul.addr %s447, 32
        %s449 = smul.addr %s448, 4
        %s450 = scalar_lea.vmem %s3, %s449
        %p451 = scmp.lt.s32.totalorder %s24, 3
        %s452 = scalar_select %p451, %s24, 3
        %s453 = smul.addr %s452, 2
        %s454 = scalar_lea.vmem %s4, %s453
        %p455 = scmp.lt.s32.totalorder %s24, 3
        %s456 = scalar_select %p455, %s24, 3
        %s457 = smul.addr %s456, 2
        %s458 = scalar_lea.vmem %s10, %s457
        %p459 = scmp.lt.s32.totalorder %s24, 3
        %s460 = scalar_select %p459, %s24, 3
        %s461 = scalar_lea.vmem %s11, %s460
        %s463 = sld [smem:[#allocation2]]
        %s464 = sld [smem:[#allocation2 + $0x1]]
        %s465 = sld [smem:[#allocation2 + $0x2]]
        %s466 = sld [smem:[#allocation2 + $0x3]]
        %v467 = vld [vmem:[%s9] sm:$0x1]
        %v468 = vld [vmem:[%s440] sm:$0xf]
        %vm469 = vcmask 125952
        %v470 = vsel %vm469, %v468, 0.0
        %v471 = vrot.slane %v470, 4
        %v472 = vadd.f32 %v470, %v471
        %v473 = vrot.slane %v472, 2
        %v474 = vadd.f32 %v472, %v473
        %v475 = vrot.slane %v474, 1
        %v476 = vadd.f32 %v474, %v475
        %v477 = vrcp.pop 4.0
        %v478 = vmul.f32 %v476, %v477
        %v479 = vpack.c.bf16 %v478, %v478
        %v480 = vld [vmem:[%s7] sm:$0xf]
        %v481 = vld [vmem:[%s7 + $0x4] sm:$0xf]
        %v484 = vunpack.c.l.b16 %v480
        %v485 = vunpack.c.l.b16 %v481
        %v486 = vpack.c.b16 %v485, %v484
        %vm488 = vcmask 130048
        %v490 = vsel %vm488, %v479, 0
        %492 = vmatprep.subr.bf16.mxu0 0
        %493 = vmatpush1.bf16.msra.mxu0 %v486
        %494 = vmatprep.subr.bf16.mxu0 0
        %495 = vmatpush1.bf16.msra.mxu0 0
        %496 = vmatprep.subr.bf16.mxu0 0
        %497 = vmatpush1.bf16.msra.mxu0 0
        %498 = vmatprep.subr.bf16.mxu0 0
        %499 = vmatpush1.bf16.msra.mxu0 0
        %500 = vmatprep.subr.bf16.mxu0 0
        %501 = vmatpush1.bf16.msra.mxu0 0
        %502 = vmatprep.subr.bf16.mxu0 0
        %503 = vmatpush1.bf16.msra.mxu0 0
        %504 = vmatprep.subr.bf16.mxu0 0
        %505 = vmatpush1.bf16.msra.mxu0 0
        %506 = vmatprep.subr.bf16.mxu0 0
        %507 = vmatpush1.bf16.msra.mxu0 0
        %508 = vmatprep.subr.bf16.mxu0 0
        %509 = vmatpush1.bf16.msra.mxu0 0
        %510 = vmatprep.subr.bf16.mxu0 0
        %511 = vmatpush1.bf16.msra.mxu0 0
        %512 = vmatprep.subr.bf16.mxu0 0
        %513 = vmatpush1.bf16.msra.mxu0 0
        %514 = vmatprep.subr.bf16.mxu0 0
        %515 = vmatpush1.bf16.msra.mxu0 0
        %516 = vmatprep.subr.bf16.mxu0 0
        %517 = vmatpush1.bf16.msra.mxu0 0
        %518 = vmatprep.subr.bf16.mxu0 0
        %519 = vmatpush1.bf16.msra.mxu0 0
        %520 = vmatprep.subr.bf16.mxu0 0
        %521 = vmatpush1.bf16.msra.mxu0 0
        %522 = vmatprep.subr.bf16.mxu0 0
        %523 = vmatpush1.bf16.msra.mxu0 0
        %524 = vmatprep.mubr.bf16.mxu0 0
        %525 = vmatmul.mubr.bf16.gmra.mrb[0].mxu0 %v490
        %v526 = vpop.f32.mrb[0].mxu0
        %v527 = vadd.f32 %v467, %v526
        %v528 = vpop.f32.mrb[0].mxu0
        %v529 = vpop.f32.mrb[0].mxu0
        %v530 = vpop.f32.mrb[0].mxu0
        %531 = vdwg.mxu0
        %v532 = vld [vmem:[%s445] sm:$0xf]
        %v533 = vld [vmem:[%s445 + $0x4] sm:$0xf]
        %v534 = vld [vmem:[%s445 + $0x8] sm:$0xf]
        %v535 = vld [vmem:[%s445 + $0xc] sm:$0xf]
        %v536 = vld [vmem:[%s445 + $0x10] sm:$0xf]
        %v537 = vld [vmem:[%s445 + $0x14] sm:$0xf]
        %v538 = vld [vmem:[%s445 + $0x18] sm:$0xf]
        %v539 = vld [vmem:[%s445 + $0x1c] sm:$0xf]
        %v540 = vld [vmem:[%s445 + $0x20] sm:$0xf]
        %v541 = vld [vmem:[%s445 + $0x24] sm:$0xf]
        %v542 = vld [vmem:[%s445 + $0x28] sm:$0xf]
        %v543 = vld [vmem:[%s445 + $0x2c] sm:$0xf]
        %v544 = vld [vmem:[%s445 + $0x30] sm:$0xf]
        %v545 = vld [vmem:[%s445 + $0x34] sm:$0xf]
        %v546 = vld [vmem:[%s445 + $0x38] sm:$0xf]
        %v547 = vld [vmem:[%s445 + $0x3c] sm:$0xf]
        %v548 = vld [vmem:[%s445 + $0x40] sm:$0xf]
        %v549 = vld [vmem:[%s445 + $0x44] sm:$0xf]
        %v550 = vld [vmem:[%s445 + $0x48] sm:$0xf]
        %v551 = vld [vmem:[%s445 + $0x4c] sm:$0xf]
        %v552 = vld [vmem:[%s445 + $0x50] sm:$0xf]
        %v553 = vld [vmem:[%s445 + $0x54] sm:$0xf]
        %v554 = vld [vmem:[%s445 + $0x58] sm:$0xf]
        %v555 = vld [vmem:[%s445 + $0x5c] sm:$0xf]
        %v556 = vld [vmem:[%s445 + $0x60] sm:$0xf]
        %v557 = vld [vmem:[%s445 + $0x64] sm:$0xf]
        %v558 = vld [vmem:[%s445 + $0x68] sm:$0xf]
        %v559 = vld [vmem:[%s445 + $0x6c] sm:$0xf]
        %v560 = vld [vmem:[%s445 + $0x70] sm:$0xf]
        %v561 = vld [vmem:[%s445 + $0x74] sm:$0xf]
        %v562 = vld [vmem:[%s445 + $0x78] sm:$0xf]
        %v563 = vld [vmem:[%s445 + $0x7c] sm:$0xf]
        %v564 = vld [vmem:[%s5] sm:$0xf]
        %v565 = vld [vmem:[%s5 + $0x4] sm:$0xf]
        %v566 = vld [vmem:[%s5 + $0x8] sm:$0xf]
        %v567 = vld [vmem:[%s5 + $0xc] sm:$0xf]
        %v568 = vld [vmem:[%s450] sm:$0xf]
        %v569 = vld [vmem:[%s450 + $0x4] sm:$0xf]
        %v570 = vld [vmem:[%s450 + $0x8] sm:$0xf]
        %v571 = vld [vmem:[%s450 + $0xc] sm:$0xf]
        %v572 = vld [vmem:[%s450 + $0x10] sm:$0xf]
        %v573 = vld [vmem:[%s450 + $0x14] sm:$0xf]
        %v574 = vld [vmem:[%s450 + $0x18] sm:$0xf]
        %v575 = vld [vmem:[%s450 + $0x1c] sm:$0xf]
        %v576 = vld [vmem:[%s450 + $0x20] sm:$0xf]
        %v577 = vld [vmem:[%s450 + $0x24] sm:$0xf]
        %v578 = vld [vmem:[%s450 + $0x28] sm:$0xf]
        %v579 = vld [vmem:[%s450 + $0x2c] sm:$0xf]
        %v580 = vld [vmem:[%s450 + $0x30] sm:$0xf]
        %v581 = vld [vmem:[%s450 + $0x34] sm:$0xf]
        %v582 = vld [vmem:[%s450 + $0x38] sm:$0xf]
        %v583 = vld [vmem:[%s450 + $0x3c] sm:$0xf]
        %v584 = vld [vmem:[%s450 + $0x40] sm:$0xf]
        %v585 = vld [vmem:[%s450 + $0x44] sm:$0xf]
        %v586 = vld [vmem:[%s450 + $0x48] sm:$0xf]
        %v587 = vld [vmem:[%s450 + $0x4c] sm:$0xf]
        %v588 = vld [vmem:[%s450 + $0x50] sm:$0xf]
        %v589 = vld [vmem:[%s450 + $0x54] sm:$0xf]
        %v590 = vld [vmem:[%s450 + $0x58] sm:$0xf]
        %v591 = vld [vmem:[%s450 + $0x5c] sm:$0xf]
        %v592 = vld [vmem:[%s450 + $0x60] sm:$0xf]
        %v593 = vld [vmem:[%s450 + $0x64] sm:$0xf]
        %v594 = vld [vmem:[%s450 + $0x68] sm:$0xf]
        %v595 = vld [vmem:[%s450 + $0x6c] sm:$0xf]
        %v596 = vld [vmem:[%s450 + $0x70] sm:$0xf]
        %v597 = vld [vmem:[%s450 + $0x74] sm:$0xf]
        %v598 = vld [vmem:[%s450 + $0x78] sm:$0xf]
        %v599 = vld [vmem:[%s450 + $0x7c] sm:$0xf]
        %v600 = vld [vmem:[%s6] sm:$0xf]
        %v601 = vld [vmem:[%s6 + $0x4] sm:$0xf]
        %v634 = vunpack.c.l.b16 %v568
        %v635 = vunpack.c.l.b16 %v569
        %v636 = vunpack.c.l.b16 %v570
        %v637 = vunpack.c.l.b16 %v571
        %v638 = vunpack.c.l.b16 %v572
        %v639 = vunpack.c.l.b16 %v573
        %v640 = vunpack.c.l.b16 %v574
        %v641 = vunpack.c.l.b16 %v575
        %v642 = vunpack.c.l.b16 %v576
        %v643 = vunpack.c.l.b16 %v577
        %v644 = vunpack.c.l.b16 %v578
        %v645 = vunpack.c.l.b16 %v579
        %v646 = vunpack.c.l.b16 %v580
        %v647 = vunpack.c.l.b16 %v581
        %v648 = vunpack.c.l.b16 %v582
        %v649 = vunpack.c.l.b16 %v583
        %v650 = vunpack.c.l.b16 %v584
        %v651 = vunpack.c.l.b16 %v585
        %v652 = vunpack.c.l.b16 %v586
        %v653 = vunpack.c.l.b16 %v587
        %v654 = vunpack.c.l.b16 %v588
        %v655 = vunpack.c.l.b16 %v589
        %v656 = vunpack.c.l.b16 %v590
        %v657 = vunpack.c.l.b16 %v591
        %v658 = vunpack.c.l.b16 %v592
        %v659 = vunpack.c.l.b16 %v593
        %v660 = vunpack.c.l.b16 %v594
        %v661 = vunpack.c.l.b16 %v595
        %v662 = vunpack.c.l.b16 %v596
        %v663 = vunpack.c.l.b16 %v597
        %v664 = vunpack.c.l.b16 %v598
        %v665 = vunpack.c.l.b16 %v599
        %v666 = vpack.c.b16 %v635, %v634
        %v667 = vpack.c.b16 %v637, %v636
        %v668 = vpack.c.b16 %v639, %v638
        %v669 = vpack.c.b16 %v641, %v640
        %v670 = vpack.c.b16 %v643, %v642
        %v671 = vpack.c.b16 %v645, %v644
        %v672 = vpack.c.b16 %v647, %v646
        %v673 = vpack.c.b16 %v649, %v648
        %v674 = vpack.c.b16 %v651, %v650
        %v675 = vpack.c.b16 %v653, %v652
        %v676 = vpack.c.b16 %v655, %v654
        %v677 = vpack.c.b16 %v657, %v656
        %v678 = vpack.c.b16 %v659, %v658
        %v679 = vpack.c.b16 %v661, %v660
        %v680 = vpack.c.b16 %v663, %v662
        %v681 = vpack.c.b16 %v665, %v664
        %v684 = vunpack.c.l.b16 %v600
        %v685 = vunpack.c.l.b16 %v601
        %v686 = vpack.c.b16 %v685, %v684
        %v689 = vsel %vm488, %v666, 0
        %v692 = vsel %vm488, %v667, 0
        %v695 = vsel %vm488, %v668, 0
        %v698 = vsel %vm488, %v669, 0
        %v701 = vsel %vm488, %v670, 0
        %v704 = vsel %vm488, %v671, 0
        %v707 = vsel %vm488, %v672, 0
        %v710 = vsel %vm488, %v673, 0
        %v713 = vsel %vm488, %v674, 0
        %v716 = vsel %vm488, %v675, 0
        %v719 = vsel %vm488, %v676, 0
        %v722 = vsel %vm488, %v677, 0
        %v725 = vsel %vm488, %v678, 0
        %v728 = vsel %vm488, %v679, 0
        %v731 = vsel %vm488, %v680, 0
        %v734 = vsel %vm488, %v681, 0
        %736 = vmatprep.subr.bf16.mxu0 0
        %737 = vmatpush1.bf16.msra.mxu0 %v686
        %738 = vmatprep.subr.bf16.mxu0 0
        %739 = vmatpush1.bf16.msra.mxu0 0
        %740 = vmatprep.subr.bf16.mxu0 0
        %741 = vmatpush1.bf16.msra.mxu0 0
        %742 = vmatprep.subr.bf16.mxu0 0
        %743 = vmatpush1.bf16.msra.mxu0 0
        %744 = vmatprep.subr.bf16.mxu0 0
        %745 = vmatpush1.bf16.msra.mxu0 0
        %746 = vmatprep.subr.bf16.mxu0 0
        %747 = vmatpush1.bf16.msra.mxu0 0
        %748 = vmatprep.subr.bf16.mxu0 0
        %749 = vmatpush1.bf16.msra.mxu0 0
        %750 = vmatprep.subr.bf16.mxu0 0
        %751 = vmatpush1.bf16.msra.mxu0 0
        %752 = vmatprep.subr.bf16.mxu0 0
        %753 = vmatpush1.bf16.msra.mxu0 0
        %754 = vmatprep.subr.bf16.mxu0 0
        %755 = vmatpush1.bf16.msra.mxu0 0
        %756 = vmatprep.subr.bf16.mxu0 0
        %757 = vmatpush1.bf16.msra.mxu0 0
        %758 = vmatprep.subr.bf16.mxu0 0
        %759 = vmatpush1.bf16.msra.mxu0 0
        %760 = vmatprep.subr.bf16.mxu0 0
        %761 = vmatpush1.bf16.msra.mxu0 0
        %762 = vmatprep.subr.bf16.mxu0 0
        %763 = vmatpush1.bf16.msra.mxu0 0
        %764 = vmatprep.subr.bf16.mxu0 0
        %765 = vmatpush1.bf16.msra.mxu0 0
        %766 = vmatprep.subr.bf16.mxu0 0
        %767 = vmatpush1.bf16.msra.mxu0 0
        %768 = vmatprep.mubr.bf16.mxu0 0
        %769 = vmatmul.mubr.bf16.gmra.mrb[0].mxu0 %v689
        %v770 = vpop.f32.mrb[0].mxu0
        %v771 = vadd.f32 0.0, %v770
        %v772 = vpop.f32.mrb[0].mxu0
        %v773 = vpop.f32.mrb[0].mxu0
        %v774 = vadd.f32 0.0, %v773
        %v775 = vpop.f32.mrb[0].mxu0
        %776 = vmatprep.mubr.bf16.mxu0 0
        %777 = vmatmul.mubr.bf16.gmra.mrb[0].mxu0 %v692
        %v778 = vpop.f32.mrb[0].mxu0
        %v779 = vadd.f32 0.0, %v778
        %v780 = vpop.f32.mrb[0].mxu0
        %v781 = vpop.f32.mrb[0].mxu0
        %v782 = vadd.f32 0.0, %v781
        %v783 = vpop.f32.mrb[0].mxu0
        %784 = vmatprep.mubr.bf16.mxu0 0
        %785 = vmatmul.mubr.bf16.gmra.mrb[0].mxu0 %v695
        %v786 = vpop.f32.mrb[0].mxu0
        %v787 = vadd.f32 0.0, %v786
        %v788 = vpop.f32.mrb[0].mxu0
        %v789 = vpop.f32.mrb[0].mxu0
        %v790 = vadd.f32 0.0, %v789
        %v791 = vpop.f32.mrb[0].mxu0
        %792 = vmatprep.mubr.bf16.mxu0 0
        %793 = vmatmul.mubr.bf16.gmra.mrb[0].mxu0 %v698
        %v794 = vpop.f32.mrb[0].mxu0
        %v795 = vadd.f32 0.0, %v794
        %v796 = vpop.f32.mrb[0].mxu0
        %v797 = vpop.f32.mrb[0].mxu0
        %v798 = vadd.f32 0.0, %v797
        %v799 = vpop.f32.mrb[0].mxu0
        %800 = vmatprep.mubr.bf16.mxu0 0
        %801 = vmatmul.mubr.bf16.gmra.mrb[0].mxu0 %v701
        %v802 = vpop.f32.mrb[0].mxu0
        %v803 = vadd.f32 0.0, %v802
        %v804 = vpop.f32.mrb[0].mxu0
        %v805 = vpop.f32.mrb[0].mxu0
        %v806 = vadd.f32 0.0, %v805
        %v807 = vpop.f32.mrb[0].mxu0
        %808 = vmatprep.mubr.bf16.mxu0 0
        %809 = vmatmul.mubr.bf16.gmra.mrb[0].mxu0 %v704
        %v810 = vpop.f32.mrb[0].mxu0
        %v811 = vadd.f32 0.0, %v810
        %v812 = vpop.f32.mrb[0].mxu0
        %v813 = vpop.f32.mrb[0].mxu0
        %v814 = vadd.f32 0.0, %v813
        %v815 = vpop.f32.mrb[0].mxu0
        %816 = vmatprep.mubr.bf16.mxu0 0
        %817 = vmatmul.mubr.bf16.gmra.mrb[0].mxu0 %v707
        %v818 = vpop.f32.mrb[0].mxu0
        %v819 = vadd.f32 0.0, %v818
        %v820 = vpop.f32.mrb[0].mxu0
        %v821 = vpop.f32.mrb[0].mxu0
        %v822 = vadd.f32 0.0, %v821
        %v823 = vpop.f32.mrb[0].mxu0
        %824 = vmatprep.mubr.bf16.mxu0 0
        %825 = vmatmul.mubr.bf16.gmra.mrb[0].mxu0 %v710
        %v826 = vpop.f32.mrb[0].mxu0
        %v827 = vadd.f32 0.0, %v826
        %v828 = vpop.f32.mrb[0].mxu0
        %v829 = vpop.f32.mrb[0].mxu0
        %v830 = vadd.f32 0.0, %v829
        %v831 = vpop.f32.mrb[0].mxu0
        %832 = vmatprep.mubr.bf16.mxu0 0
        %833 = vmatmul.mubr.bf16.gmra.mrb[0].mxu0 %v713
        %v834 = vpop.f32.mrb[0].mxu0
        %v835 = vadd.f32 0.0, %v834
        %v836 = vpop.f32.mrb[0].mxu0
        %v837 = vpop.f32.mrb[0].mxu0
        %v838 = vadd.f32 0.0, %v837
        %v839 = vpop.f32.mrb[0].mxu0
        %840 = vmatprep.mubr.bf16.mxu0 0
        %841 = vmatmul.mubr.bf16.gmra.mrb[0].mxu0 %v716
        %v842 = vpop.f32.mrb[0].mxu0
        %v843 = vadd.f32 0.0, %v842
        %v844 = vpop.f32.mrb[0].mxu0
        %v845 = vpop.f32.mrb[0].mxu0
        %v846 = vadd.f32 0.0, %v845
        %v847 = vpop.f32.mrb[0].mxu0
        %848 = vmatprep.mubr.bf16.mxu0 0
        %849 = vmatmul.mubr.bf16.gmra.mrb[0].mxu0 %v719
        %v850 = vpop.f32.mrb[0].mxu0
        %v851 = vadd.f32 0.0, %v850
        %v852 = vpop.f32.mrb[0].mxu0
        %v853 = vpop.f32.mrb[0].mxu0
        %v854 = vadd.f32 0.0, %v853
        %v855 = vpop.f32.mrb[0].mxu0
        %856 = vmatprep.mubr.bf16.mxu0 0
        %857 = vmatmul.mubr.bf16.gmra.mrb[0].mxu0 %v722
        %v858 = vpop.f32.mrb[0].mxu0
        %v859 = vadd.f32 0.0, %v858
        %v860 = vpop.f32.mrb[0].mxu0
        %v861 = vpop.f32.mrb[0].mxu0
        %v862 = vadd.f32 0.0, %v861
        %v863 = vpop.f32.mrb[0].mxu0
        %864 = vmatprep.mubr.bf16.mxu0 0
        %865 = vmatmul.mubr.bf16.gmra.mrb[0].mxu0 %v725
        %v866 = vpop.f32.mrb[0].mxu0
        %v867 = vadd.f32 0.0, %v866
        %v868 = vpop.f32.mrb[0].mxu0
        %v869 = vpop.f32.mrb[0].mxu0
        %v870 = vadd.f32 0.0, %v869
        %v871 = vpop.f32.mrb[0].mxu0
        %872 = vmatprep.mubr.bf16.mxu0 0
        %873 = vmatmul.mubr.bf16.gmra.mrb[0].mxu0 %v728
        %v874 = vpop.f32.mrb[0].mxu0
        %v875 = vadd.f32 0.0, %v874
        %v876 = vpop.f32.mrb[0].mxu0
        %v877 = vpop.f32.mrb[0].mxu0
        %v878 = vadd.f32 0.0, %v877
        %v879 = vpop.f32.mrb[0].mxu0
        %880 = vmatprep.mubr.bf16.mxu0 0
        %881 = vmatmul.mubr.bf16.gmra.mrb[0].mxu0 %v731
        %v882 = vpop.f32.mrb[0].mxu0
        %v883 = vadd.f32 0.0, %v882
        %v884 = vpop.f32.mrb[0].mxu0
        %v885 = vpop.f32.mrb[0].mxu0
        %v886 = vadd.f32 0.0, %v885
        %v887 = vpop.f32.mrb[0].mxu0
        %888 = vmatprep.mubr.bf16.mxu0 0
        %889 = vmatmul.mubr.bf16.gmra.mrb[0].mxu0 %v734
        %v890 = vpop.f32.mrb[0].mxu0
        %v891 = vadd.f32 0.0, %v890
        %v892 = vpop.f32.mrb[0].mxu0
        %v893 = vpop.f32.mrb[0].mxu0
        %v894 = vadd.f32 0.0, %v893
        %v895 = vpop.f32.mrb[0].mxu0
        %896 = vdwg.mxu0
        %v929 = vunpack.c.l.b16 %v532
        %v930 = vunpack.c.l.b16 %v533
        %v931 = vunpack.c.l.b16 %v534
        %v932 = vunpack.c.l.b16 %v535
        %v933 = vunpack.c.l.b16 %v536
        %v934 = vunpack.c.l.b16 %v537
        %v935 = vunpack.c.l.b16 %v538
        %v936 = vunpack.c.l.b16 %v539
        %v937 = vunpack.c.l.b16 %v540
        %v938 = vunpack.c.l.b16 %v541
        %v939 = vunpack.c.l.b16 %v542
        %v940 = vunpack.c.l.b16 %v543
        %v941 = vunpack.c.l.b16 %v544
        %v942 = vunpack.c.l.b16 %v545
        %v943 = vunpack.c.l.b16 %v546
        %v944 = vunpack.c.l.b16 %v547
        %v945 = vunpack.c.l.b16 %v548
        %v946 = vunpack.c.l.b16 %v549
        %v947 = vunpack.c.l.b16 %v550
        %v948 = vunpack.c.l.b16 %v551
        %v949 = vunpack.c.l.b16 %v552
        %v950 = vunpack.c.l.b16 %v553
        %v951 = vunpack.c.l.b16 %v554
        %v952 = vunpack.c.l.b16 %v555
        %v953 = vunpack.c.l.b16 %v556
        %v954 = vunpack.c.l.b16 %v557
        %v955 = vunpack.c.l.b16 %v558
        %v956 = vunpack.c.l.b16 %v559
        %v957 = vunpack.c.l.b16 %v560
        %v958 = vunpack.c.l.b16 %v561
        %v959 = vunpack.c.l.b16 %v562
        %v960 = vunpack.c.l.b16 %v563
        %v961 = vpack.c.b16 %v930, %v929
        %v962 = vpack.c.b16 %v932, %v931
        %v963 = vpack.c.b16 %v934, %v933
        %v964 = vpack.c.b16 %v936, %v935
        %v965 = vpack.c.b16 %v938, %v937
        %v966 = vpack.c.b16 %v940, %v939
        %v967 = vpack.c.b16 %v942, %v941
        %v968 = vpack.c.b16 %v944, %v943
        %v969 = vpack.c.b16 %v946, %v945
        %v970 = vpack.c.b16 %v948, %v947
        %v971 = vpack.c.b16 %v950, %v949
        %v972 = vpack.c.b16 %v952, %v951
        %v973 = vpack.c.b16 %v954, %v953
        %v974 = vpack.c.b16 %v956, %v955
        %v975 = vpack.c.b16 %v958, %v957
        %v976 = vpack.c.b16 %v960, %v959
        %v981 = vunpack.c.l.b16 %v564
        %v982 = vunpack.c.l.b16 %v565
        %v983 = vunpack.c.l.b16 %v566
        %v984 = vunpack.c.l.b16 %v567
        %v985 = vpack.c.b16 %v982, %v981
        %v986 = vpack.c.b16 %v984, %v983
        %vm989 = vcmask 261120
        %v991 = vsel %vm989, %v961, 0
        %v994 = vsel %vm989, %v962, 0
        %v997 = vsel %vm989, %v963, 0
        %v1000 = vsel %vm989, %v964, 0
        %v1003 = vsel %vm989, %v965, 0
        %v1006 = vsel %vm989, %v966, 0
        %v1009 = vsel %vm989, %v967, 0
        %v1012 = vsel %vm989, %v968, 0
        %v1015 = vsel %vm989, %v969, 0
        %v1018 = vsel %vm989, %v970, 0
        %v1021 = vsel %vm989, %v971, 0
        %v1024 = vsel %vm989, %v972, 0
        %v1027 = vsel %vm989, %v973, 0
        %v1030 = vsel %vm989, %v974, 0
        %v1033 = vsel %vm989, %v975, 0
        %v1036 = vsel %vm989, %v976, 0
        %1038 = vmatprep.subr.bf16.mxu0 0
        %1039 = vmatpush1.bf16.msra.mxu0 %v985
        %1040 = vmatprep.subr.bf16.mxu0 0
        %1041 = vmatpush1.bf16.msra.mxu0 %v986
        %1042 = vmatprep.subr.bf16.mxu0 0
        %1043 = vmatpush1.bf16.msra.mxu0 0
        %1044 = vmatprep.subr.bf16.mxu0 0
        %1045 = vmatpush1.bf16.msra.mxu0 0
        %1046 = vmatprep.subr.bf16.mxu0 0
        %1047 = vmatpush1.bf16.msra.mxu0 0
        %1048 = vmatprep.subr.bf16.mxu0 0
        %1049 = vmatpush1.bf16.msra.mxu0 0
        %1050 = vmatprep.subr.bf16.mxu0 0
        %1051 = vmatpush1.bf16.msra.mxu0 0
        %1052 = vmatprep.subr.bf16.mxu0 0
        %1053 = vmatpush1.bf16.msra.mxu0 0
        %1054 = vmatprep.subr.bf16.mxu0 0
        %1055 = vmatpush1.bf16.msra.mxu0 0
        %1056 = vmatprep.subr.bf16.mxu0 0
        %1057 = vmatpush1.bf16.msra.mxu0 0
        %1058 = vmatprep.subr.bf16.mxu0 0
        %1059 = vmatpush1.bf16.msra.mxu0 0
        %1060 = vmatprep.subr.bf16.mxu0 0
        %1061 = vmatpush1.bf16.msra.mxu0 0
        %1062 = vmatprep.subr.bf16.mxu0 0
        %1063 = vmatpush1.bf16.msra.mxu0 0
        %1064 = vmatprep.subr.bf16.mxu0 0
        %1065 = vmatpush1.bf16.msra.mxu0 0
        %1066 = vmatprep.subr.bf16.mxu0 0
        %1067 = vmatpush1.bf16.msra.mxu0 0
        %1068 = vmatprep.subr.bf16.mxu0 0
        %1069 = vmatpush1.bf16.msra.mxu0 0
        %1070 = vmatprep.mubr.bf16.mxu0 0
        %1071 = vmatmul.mubr.bf16.gmra.mrb[0].mxu0 %v991
        %v1072 = vpop.f32.mrb[0].mxu0
        %v1073 = vadd.f32 %v771, %v1072
        %v1074 = vpop.f32.mrb[0].mxu0
        %v1075 = vpop.f32.mrb[0].mxu0
        %v1076 = vadd.f32 %v774, %v1075
        %v1077 = vpop.f32.mrb[0].mxu0
        %1078 = vmatprep.mubr.bf16.mxu0 0
        %1079 = vmatmul.mubr.bf16.gmra.mrb[0].mxu0 %v994
        %v1080 = vpop.f32.mrb[0].mxu0
        %v1081 = vadd.f32 %v779, %v1080
        %v1082 = vpop.f32.mrb[0].mxu0
        %v1083 = vpop.f32.mrb[0].mxu0
        %v1084 = vadd.f32 %v782, %v1083
        %v1085 = vpop.f32.mrb[0].mxu0
        %1086 = vmatprep.mubr.bf16.mxu0 0
        %1087 = vmatmul.mubr.bf16.gmra.mrb[0].mxu0 %v997
        %v1088 = vpop.f32.mrb[0].mxu0
        %v1089 = vadd.f32 %v787, %v1088
        %v1090 = vpop.f32.mrb[0].mxu0
        %v1091 = vpop.f32.mrb[0].mxu0
        %v1092 = vadd.f32 %v790, %v1091
        %v1093 = vpop.f32.mrb[0].mxu0
        %1094 = vmatprep.mubr.bf16.mxu0 0
        %1095 = vmatmul.mubr.bf16.gmra.mrb[0].mxu0 %v1000
        %v1096 = vpop.f32.mrb[0].mxu0
        %v1097 = vadd.f32 %v795, %v1096
        %v1098 = vpop.f32.mrb[0].mxu0
        %v1099 = vpop.f32.mrb[0].mxu0
        %v1100 = vadd.f32 %v798, %v1099
        %v1101 = vpop.f32.mrb[0].mxu0
        %1102 = vmatprep.mubr.bf16.mxu0 0
        %1103 = vmatmul.mubr.bf16.gmra.mrb[0].mxu0 %v1003
        %v1104 = vpop.f32.mrb[0].mxu0
        %v1105 = vadd.f32 %v803, %v1104
        %v1106 = vpop.f32.mrb[0].mxu0
        %v1107 = vpop.f32.mrb[0].mxu0
        %v1108 = vadd.f32 %v806, %v1107
        %v1109 = vpop.f32.mrb[0].mxu0
        %1110 = vmatprep.mubr.bf16.mxu0 0
        %1111 = vmatmul.mubr.bf16.gmra.mrb[0].mxu0 %v1006
        %v1112 = vpop.f32.mrb[0].mxu0
        %v1113 = vadd.f32 %v811, %v1112
        %v1114 = vpop.f32.mrb[0].mxu0
        %v1115 = vpop.f32.mrb[0].mxu0
        %v1116 = vadd.f32 %v814, %v1115
        %v1117 = vpop.f32.mrb[0].mxu0
        %1118 = vmatprep.mubr.bf16.mxu0 0
        %1119 = vmatmul.mubr.bf16.gmra.mrb[0].mxu0 %v1009
        %v1120 = vpop.f32.mrb[0].mxu0
        %v1121 = vadd.f32 %v819, %v1120
        %v1122 = vpop.f32.mrb[0].mxu0
        %v1123 = vpop.f32.mrb[0].mxu0
        %v1124 = vadd.f32 %v822, %v1123
        %v1125 = vpop.f32.mrb[0].mxu0
        %1126 = vmatprep.mubr.bf16.mxu0 0
        %1127 = vmatmul.mubr.bf16.gmra.mrb[0].mxu0 %v1012
        %v1128 = vpop.f32.mrb[0].mxu0
        %v1129 = vadd.f32 %v827, %v1128
        %v1130 = vpop.f32.mrb[0].mxu0
        %v1131 = vpop.f32.mrb[0].mxu0
        %v1132 = vadd.f32 %v830, %v1131
        %v1133 = vpop.f32.mrb[0].mxu0
        %1134 = vmatprep.mubr.bf16.mxu0 0
        %1135 = vmatmul.mubr.bf16.gmra.mrb[0].mxu0 %v1015
        %v1136 = vpop.f32.mrb[0].mxu0
        %v1137 = vadd.f32 %v835, %v1136
        %v1138 = vpop.f32.mrb[0].mxu0
        %v1139 = vpop.f32.mrb[0].mxu0
        %v1140 = vadd.f32 %v838, %v1139
        %v1141 = vpop.f32.mrb[0].mxu0
        %1142 = vmatprep.mubr.bf16.mxu0 0
        %1143 = vmatmul.mubr.bf16.gmra.mrb[0].mxu0 %v1018
        %v1144 = vpop.f32.mrb[0].mxu0
        %v1145 = vadd.f32 %v843, %v1144
        %v1146 = vpop.f32.mrb[0].mxu0
        %v1147 = vpop.f32.mrb[0].mxu0
        %v1148 = vadd.f32 %v846, %v1147
        %v1149 = vpop.f32.mrb[0].mxu0
        %1150 = vmatprep.mubr.bf16.mxu0 0
        %1151 = vmatmul.mubr.bf16.gmra.mrb[0].mxu0 %v1021
        %v1152 = vpop.f32.mrb[0].mxu0
        %v1153 = vadd.f32 %v851, %v1152
        %v1154 = vpop.f32.mrb[0].mxu0
        %v1155 = vpop.f32.mrb[0].mxu0
        %v1156 = vadd.f32 %v854, %v1155
        %v1157 = vpop.f32.mrb[0].mxu0
        %1158 = vmatprep.mubr.bf16.mxu0 0
        %1159 = vmatmul.mubr.bf16.gmra.mrb[0].mxu0 %v1024
        %v1160 = vpop.f32.mrb[0].mxu0
        %v1161 = vadd.f32 %v859, %v1160
        %v1162 = vpop.f32.mrb[0].mxu0
        %v1163 = vpop.f32.mrb[0].mxu0
        %v1164 = vadd.f32 %v862, %v1163
        %v1165 = vpop.f32.mrb[0].mxu0
        %1166 = vmatprep.mubr.bf16.mxu0 0
        %1167 = vmatmul.mubr.bf16.gmra.mrb[0].mxu0 %v1027
        %v1168 = vpop.f32.mrb[0].mxu0
        %v1169 = vadd.f32 %v867, %v1168
        %v1170 = vpop.f32.mrb[0].mxu0
        %v1171 = vpop.f32.mrb[0].mxu0
        %v1172 = vadd.f32 %v870, %v1171
        %v1173 = vpop.f32.mrb[0].mxu0
        %1174 = vmatprep.mubr.bf16.mxu0 0
        %1175 = vmatmul.mubr.bf16.gmra.mrb[0].mxu0 %v1030
        %v1176 = vpop.f32.mrb[0].mxu0
        %v1177 = vadd.f32 %v875, %v1176
        %v1178 = vpop.f32.mrb[0].mxu0
        %v1179 = vpop.f32.mrb[0].mxu0
        %v1180 = vadd.f32 %v878, %v1179
        %v1181 = vpop.f32.mrb[0].mxu0
        %1182 = vmatprep.mubr.bf16.mxu0 0
        %1183 = vmatmul.mubr.bf16.gmra.mrb[0].mxu0 %v1033
        %v1184 = vpop.f32.mrb[0].mxu0
        %v1185 = vadd.f32 %v883, %v1184
        %v1186 = vpop.f32.mrb[0].mxu0
        %v1187 = vpop.f32.mrb[0].mxu0
        %v1188 = vadd.f32 %v886, %v1187
        %v1189 = vpop.f32.mrb[0].mxu0
        %1190 = vmatprep.mubr.bf16.mxu0 0
        %1191 = vmatmul.mubr.bf16.gmra.mrb[0].mxu0 %v1036
        %v1192 = vpop.f32.mrb[0].mxu0
        %v1193 = vadd.f32 %v891, %v1192
        %v1194 = vpop.f32.mrb[0].mxu0
        %v1195 = vpop.f32.mrb[0].mxu0
        %v1196 = vadd.f32 %v894, %v1195
        %v1197 = vpop.f32.mrb[0].mxu0
        %1198 = vdwg.mxu0
        %v1199 = vlaneseq
        %v1200 = vshrl.u32 %v1199, 7
        %v1201 = vsub.s32 0, %v1200
        %v1202 = vrot.slane %v527, %v1201
        %v1203 = vadd.f32 %v1073, %v1202
        %v1204 = vadd.f32 %v1076, %v1202
        %v1205 = vadd.f32 %v1081, %v1202
        %v1206 = vadd.f32 %v1084, %v1202
        %v1207 = vadd.f32 %v1089, %v1202
        %v1208 = vadd.f32 %v1092, %v1202
        %v1209 = vadd.f32 %v1097, %v1202
        %v1210 = vadd.f32 %v1100, %v1202
        %v1211 = vadd.f32 %v1105, %v1202
        %v1212 = vadd.f32 %v1108, %v1202
        %v1213 = vadd.f32 %v1113, %v1202
        %v1214 = vadd.f32 %v1116, %v1202
        %v1215 = vadd.f32 %v1121, %v1202
        %v1216 = vadd.f32 %v1124, %v1202
        %v1217 = vadd.f32 %v1129, %v1202
        %v1218 = vadd.f32 %v1132, %v1202
        %v1219 = vadd.f32 %v1137, %v1202
        %v1220 = vadd.f32 %v1140, %v1202
        %v1221 = vadd.f32 %v1145, %v1202
        %v1222 = vadd.f32 %v1148, %v1202
        %v1223 = vadd.f32 %v1153, %v1202
        %v1224 = vadd.f32 %v1156, %v1202
        %v1225 = vadd.f32 %v1161, %v1202
        %v1226 = vadd.f32 %v1164, %v1202
        %v1227 = vadd.f32 %v1169, %v1202
        %v1228 = vadd.f32 %v1172, %v1202
        %v1229 = vadd.f32 %v1177, %v1202
        %v1230 = vadd.f32 %v1180, %v1202
        %v1231 = vadd.f32 %v1185, %v1202
        %v1232 = vadd.f32 %v1188, %v1202
        %v1233 = vadd.f32 %v1193, %v1202
        %v1234 = vadd.f32 %v1196, %v1202
        %vm1235 = vcmp.gt.f32.partialorder %v1203, 0.0
        %vm1236 = vcmp.gt.f32.partialorder %v1204, 0.0
        %vm1237 = vcmp.gt.f32.partialorder %v1205, 0.0
        %vm1238 = vcmp.gt.f32.partialorder %v1206, 0.0
        %vm1239 = vcmp.gt.f32.partialorder %v1207, 0.0
        %vm1240 = vcmp.gt.f32.partialorder %v1208, 0.0
        %vm1241 = vcmp.gt.f32.partialorder %v1209, 0.0
        %vm1242 = vcmp.gt.f32.partialorder %v1210, 0.0
        %vm1243 = vcmp.gt.f32.partialorder %v1211, 0.0
        %vm1244 = vcmp.gt.f32.partialorder %v1212, 0.0
        %vm1245 = vcmp.gt.f32.partialorder %v1213, 0.0
        %vm1246 = vcmp.gt.f32.partialorder %v1214, 0.0
        %vm1247 = vcmp.gt.f32.partialorder %v1215, 0.0
        %vm1248 = vcmp.gt.f32.partialorder %v1216, 0.0
        %vm1249 = vcmp.gt.f32.partialorder %v1217, 0.0
        %vm1250 = vcmp.gt.f32.partialorder %v1218, 0.0
        %vm1251 = vcmp.gt.f32.partialorder %v1219, 0.0
        %vm1252 = vcmp.gt.f32.partialorder %v1220, 0.0
        %vm1253 = vcmp.gt.f32.partialorder %v1221, 0.0
        %vm1254 = vcmp.gt.f32.partialorder %v1222, 0.0
        %vm1255 = vcmp.gt.f32.partialorder %v1223, 0.0
        %vm1256 = vcmp.gt.f32.partialorder %v1224, 0.0
        %vm1257 = vcmp.gt.f32.partialorder %v1225, 0.0
        %vm1258 = vcmp.gt.f32.partialorder %v1226, 0.0
        %vm1259 = vcmp.gt.f32.partialorder %v1227, 0.0
        %vm1260 = vcmp.gt.f32.partialorder %v1228, 0.0
        %vm1261 = vcmp.gt.f32.partialorder %v1229, 0.0
        %vm1262 = vcmp.gt.f32.partialorder %v1230, 0.0
        %vm1263 = vcmp.gt.f32.partialorder %v1231, 0.0
        %vm1264 = vcmp.gt.f32.partialorder %v1232, 0.0
        %vm1265 = vcmp.gt.f32.partialorder %v1233, 0.0
        %vm1266 = vcmp.gt.f32.partialorder %v1234, 0.0
        %v1267 = vmul.f32 %v1203, 0.01
        %v1268 = vmul.f32 %v1204, 0.01
        %v1269 = vmul.f32 %v1205, 0.01
        %v1270 = vmul.f32 %v1206, 0.01
        %v1271 = vmul.f32 %v1207, 0.01
        %v1272 = vmul.f32 %v1208, 0.01
        %v1273 = vmul.f32 %v1209, 0.01
        %v1274 = vmul.f32 %v1210, 0.01
        %v1275 = vmul.f32 %v1211, 0.01
        %v1276 = vmul.f32 %v1212, 0.01
        %v1277 = vmul.f32 %v1213, 0.01
        %v1278 = vmul.f32 %v1214, 0.01
        %v1279 = vmul.f32 %v1215, 0.01
        %v1280 = vmul.f32 %v1216, 0.01
        %v1281 = vmul.f32 %v1217, 0.01
        %v1282 = vmul.f32 %v1218, 0.01
        %v1283 = vmul.f32 %v1219, 0.01
        %v1284 = vmul.f32 %v1220, 0.01
        %v1285 = vmul.f32 %v1221, 0.01
        %v1286 = vmul.f32 %v1222, 0.01
        %v1287 = vmul.f32 %v1223, 0.01
        %v1288 = vmul.f32 %v1224, 0.01
        %v1289 = vmul.f32 %v1225, 0.01
        %v1290 = vmul.f32 %v1226, 0.01
        %v1291 = vmul.f32 %v1227, 0.01
        %v1292 = vmul.f32 %v1228, 0.01
        %v1293 = vmul.f32 %v1229, 0.01
        %v1294 = vmul.f32 %v1230, 0.01
        %v1295 = vmul.f32 %v1231, 0.01
        %v1296 = vmul.f32 %v1232, 0.01
        %v1297 = vmul.f32 %v1233, 0.01
        %v1298 = vmul.f32 %v1234, 0.01
        %v1299 = vsel %vm1235, %v1203, %v1267
        %v1300 = vsel %vm1236, %v1204, %v1268
        %v1301 = vsel %vm1237, %v1205, %v1269
        %v1302 = vsel %vm1238, %v1206, %v1270
        %v1303 = vsel %vm1239, %v1207, %v1271
        %v1304 = vsel %vm1240, %v1208, %v1272
        %v1305 = vsel %vm1241, %v1209, %v1273
        %v1306 = vsel %vm1242, %v1210, %v1274
        %v1307 = vsel %vm1243, %v1211, %v1275
        %v1308 = vsel %vm1244, %v1212, %v1276
        %v1309 = vsel %vm1245, %v1213, %v1277
        %v1310 = vsel %vm1246, %v1214, %v1278
        %v1311 = vsel %vm1247, %v1215, %v1279
        %v1312 = vsel %vm1248, %v1216, %v1280
        %v1313 = vsel %vm1249, %v1217, %v1281
        %v1314 = vsel %vm1250, %v1218, %v1282
        %v1315 = vsel %vm1251, %v1219, %v1283
        %v1316 = vsel %vm1252, %v1220, %v1284
        %v1317 = vsel %vm1253, %v1221, %v1285
        %v1318 = vsel %vm1254, %v1222, %v1286
        %v1319 = vsel %vm1255, %v1223, %v1287
        %v1320 = vsel %vm1256, %v1224, %v1288
        %v1321 = vsel %vm1257, %v1225, %v1289
        %v1322 = vsel %vm1258, %v1226, %v1290
        %v1323 = vsel %vm1259, %v1227, %v1291
        %v1324 = vsel %vm1260, %v1228, %v1292
        %v1325 = vsel %vm1261, %v1229, %v1293
        %v1326 = vsel %vm1262, %v1230, %v1294
        %v1327 = vsel %vm1263, %v1231, %v1295
        %v1328 = vsel %vm1264, %v1232, %v1296
        %v1329 = vsel %vm1265, %v1233, %v1297
        %v1330 = vsel %vm1266, %v1234, %v1298
        %v1331 = vpack.c.bf16 %v1300, %v1299
        %v1332 = vpack.c.bf16 %v1302, %v1301
        %v1333 = vpack.c.bf16 %v1304, %v1303
        %v1334 = vpack.c.bf16 %v1306, %v1305
        %v1335 = vpack.c.bf16 %v1308, %v1307
        %v1336 = vpack.c.bf16 %v1310, %v1309
        %v1337 = vpack.c.bf16 %v1312, %v1311
        %v1338 = vpack.c.bf16 %v1314, %v1313
        %v1339 = vpack.c.bf16 %v1316, %v1315
        %v1340 = vpack.c.bf16 %v1318, %v1317
        %v1341 = vpack.c.bf16 %v1320, %v1319
        %v1342 = vpack.c.bf16 %v1322, %v1321
        %v1343 = vpack.c.bf16 %v1324, %v1323
        %v1344 = vpack.c.bf16 %v1326, %v1325
        %v1345 = vpack.c.bf16 %v1328, %v1327
        %v1346 = vpack.c.bf16 %v1330, %v1329
        %v1347 = vld [vmem:[%s8] sm:$0xf]
        %v1348 = vld [vmem:[%s8 + $0x4] sm:$0xf]
        %v1349 = vld [vmem:[%s8 + $0x8] sm:$0xf]
        %v1350 = vld [vmem:[%s8 + $0xc] sm:$0xf]
        %v1352 = vlaneseq
        %v1353 = vshrl.u32 %v1352, 7
        %v1354 = vsub.s32 0, %v1353
        %v1355 = vrot.slane %v467, %v1354
        %v1360 = vunpack.c.l.b16 %v1347
        %v1361 = vunpack.c.l.b16 %v1348
        %v1362 = vunpack.c.l.b16 %v1349
        %v1363 = vunpack.c.l.b16 %v1350
        %v1364 = vpack.c.b16 %v1361, %v1360
        %v1365 = vpack.c.b16 %v1363, %v1362
        %1368 = vrot.lane.b32.xlu0 %v1355, 96
        %v1369 = vpop.permute.xlu0 %1368
        %v1372 = vsel %vm989, %v1331, 0
        %v1375 = vsel %vm989, %v1332, 0
        %v1378 = vsel %vm989, %v1333, 0
        %v1381 = vsel %vm989, %v1334, 0
        %v1384 = vsel %vm989, %v1335, 0
        %v1387 = vsel %vm989, %v1336, 0
        %v1390 = vsel %vm989, %v1337, 0
        %v1393 = vsel %vm989, %v1338, 0
        %v1396 = vsel %vm989, %v1339, 0
        %v1399 = vsel %vm989, %v1340, 0
        %v1402 = vsel %vm989, %v1341, 0
        %v1405 = vsel %vm989, %v1342, 0
        %v1408 = vsel %vm989, %v1343, 0
        %v1411 = vsel %vm989, %v1344, 0
        %v1414 = vsel %vm989, %v1345, 0
        %v1417 = vsel %vm989, %v1346, 0
        %1419 = vmatprep.subr.bf16.mxu0 0
        %1420 = vmatpush1.bf16.msra.mxu0 %v1364
        %1421 = vmatprep.subr.bf16.mxu0 0
        %1422 = vmatpush1.bf16.msra.mxu0 %v1365
        %1423 = vmatprep.subr.bf16.mxu0 0
        %1424 = vmatpush1.bf16.msra.mxu0 0
        %1425 = vmatprep.subr.bf16.mxu0 0
        %1426 = vmatpush1.bf16.msra.mxu0 0
        %1427 = vmatprep.subr.bf16.mxu0 0
        %1428 = vmatpush1.bf16.msra.mxu0 0
        %1429 = vmatprep.subr.bf16.mxu0 0
        %1430 = vmatpush1.bf16.msra.mxu0 0
        %1431 = vmatprep.subr.bf16.mxu0 0
        %1432 = vmatpush1.bf16.msra.mxu0 0
        %1433 = vmatprep.subr.bf16.mxu0 0
        %1434 = vmatpush1.bf16.msra.mxu0 0
        %1435 = vmatprep.subr.bf16.mxu0 0
        %1436 = vmatpush1.bf16.msra.mxu0 0
        %1437 = vmatprep.subr.bf16.mxu0 0
        %1438 = vmatpush1.bf16.msra.mxu0 0
        %1439 = vmatprep.subr.bf16.mxu0 0
        %1440 = vmatpush1.bf16.msra.mxu0 0
        %1441 = vmatprep.subr.bf16.mxu0 0
        %1442 = vmatpush1.bf16.msra.mxu0 0
        %1443 = vmatprep.subr.bf16.mxu0 0
        %1444 = vmatpush1.bf16.msra.mxu0 0
        %1445 = vmatprep.subr.bf16.mxu0 0
        %1446 = vmatpush1.bf16.msra.mxu0 0
        %1447 = vmatprep.subr.bf16.mxu0 0
        %1448 = vmatpush1.bf16.msra.mxu0 0
        %1449 = vmatprep.subr.bf16.mxu0 0
        %1450 = vmatpush1.bf16.msra.mxu0 0
        %1451 = vmatprep.mubr.bf16.mxu0 0
        %1452 = vmatmul.mubr.bf16.gmra.mrb[0].mxu0 %v1372
        %v1453 = vpop.f32.mrb[0].mxu0
        %v1454 = vadd.f32 %v1369, %v1453
        %v1455 = vpop.f32.mrb[0].mxu0
        %v1456 = vpop.f32.mrb[0].mxu0
        %v1457 = vadd.f32 %v1369, %v1456
        %v1458 = vpop.f32.mrb[0].mxu0
        %1459 = vmatprep.mubr.bf16.mxu0 0
        %1460 = vmatmul.mubr.bf16.gmra.mrb[0].mxu0 %v1375
        %v1461 = vpop.f32.mrb[0].mxu0
        %v1462 = vadd.f32 %v1369, %v1461
        %v1463 = vpop.f32.mrb[0].mxu0
        %v1464 = vpop.f32.mrb[0].mxu0
        %v1465 = vadd.f32 %v1369, %v1464
        %v1466 = vpop.f32.mrb[0].mxu0
        %1467 = vmatprep.mubr.bf16.mxu0 0
        %1468 = vmatmul.mubr.bf16.gmra.mrb[0].mxu0 %v1378
        %v1469 = vpop.f32.mrb[0].mxu0
        %v1470 = vadd.f32 %v1369, %v1469
        %v1471 = vpop.f32.mrb[0].mxu0
        %v1472 = vpop.f32.mrb[0].mxu0
        %v1473 = vadd.f32 %v1369, %v1472
        %v1474 = vpop.f32.mrb[0].mxu0
        %1475 = vmatprep.mubr.bf16.mxu0 0
        %1476 = vmatmul.mubr.bf16.gmra.mrb[0].mxu0 %v1381
        %v1477 = vpop.f32.mrb[0].mxu0
        %v1478 = vadd.f32 %v1369, %v1477
        %v1479 = vpop.f32.mrb[0].mxu0
        %v1480 = vpop.f32.mrb[0].mxu0
        %v1481 = vadd.f32 %v1369, %v1480
        %v1482 = vpop.f32.mrb[0].mxu0
        %1483 = vmatprep.mubr.bf16.mxu0 0
        %1484 = vmatmul.mubr.bf16.gmra.mrb[0].mxu0 %v1384
        %v1485 = vpop.f32.mrb[0].mxu0
        %v1486 = vadd.f32 %v1369, %v1485
        %v1487 = vpop.f32.mrb[0].mxu0
        %v1488 = vpop.f32.mrb[0].mxu0
        %v1489 = vadd.f32 %v1369, %v1488
        %v1490 = vpop.f32.mrb[0].mxu0
        %1491 = vmatprep.mubr.bf16.mxu0 0
        %1492 = vmatmul.mubr.bf16.gmra.mrb[0].mxu0 %v1387
        %v1493 = vpop.f32.mrb[0].mxu0
        %v1494 = vadd.f32 %v1369, %v1493
        %v1495 = vpop.f32.mrb[0].mxu0
        %v1496 = vpop.f32.mrb[0].mxu0
        %v1497 = vadd.f32 %v1369, %v1496
        %v1498 = vpop.f32.mrb[0].mxu0
        %1499 = vmatprep.mubr.bf16.mxu0 0
        %1500 = vmatmul.mubr.bf16.gmra.mrb[0].mxu0 %v1390
        %v1501 = vpop.f32.mrb[0].mxu0
        %v1502 = vadd.f32 %v1369, %v1501
        %v1503 = vpop.f32.mrb[0].mxu0
        %v1504 = vpop.f32.mrb[0].mxu0
        %v1505 = vadd.f32 %v1369, %v1504
        %v1506 = vpop.f32.mrb[0].mxu0
        %1507 = vmatprep.mubr.bf16.mxu0 0
        %1508 = vmatmul.mubr.bf16.gmra.mrb[0].mxu0 %v1393
        %v1509 = vpop.f32.mrb[0].mxu0
        %v1510 = vadd.f32 %v1369, %v1509
        %v1511 = vpop.f32.mrb[0].mxu0
        %v1512 = vpop.f32.mrb[0].mxu0
        %v1513 = vadd.f32 %v1369, %v1512
        %v1514 = vpop.f32.mrb[0].mxu0
        %1515 = vmatprep.mubr.bf16.mxu0 0
        %1516 = vmatmul.mubr.bf16.gmra.mrb[0].mxu0 %v1396
        %v1517 = vpop.f32.mrb[0].mxu0
        %v1518 = vadd.f32 %v1369, %v1517
        %v1519 = vpop.f32.mrb[0].mxu0
        %v1520 = vpop.f32.mrb[0].mxu0
        %v1521 = vadd.f32 %v1369, %v1520
        %v1522 = vpop.f32.mrb[0].mxu0
        %1523 = vmatprep.mubr.bf16.mxu0 0
        %1524 = vmatmul.mubr.bf16.gmra.mrb[0].mxu0 %v1399
        %v1525 = vpop.f32.mrb[0].mxu0
        %v1526 = vadd.f32 %v1369, %v1525
        %v1527 = vpop.f32.mrb[0].mxu0
        %v1528 = vpop.f32.mrb[0].mxu0
        %v1529 = vadd.f32 %v1369, %v1528
        %v1530 = vpop.f32.mrb[0].mxu0
        %1531 = vmatprep.mubr.bf16.mxu0 0
        %1532 = vmatmul.mubr.bf16.gmra.mrb[0].mxu0 %v1402
        %v1533 = vpop.f32.mrb[0].mxu0
        %v1534 = vadd.f32 %v1369, %v1533
        %v1535 = vpop.f32.mrb[0].mxu0
        %v1536 = vpop.f32.mrb[0].mxu0
        %v1537 = vadd.f32 %v1369, %v1536
        %v1538 = vpop.f32.mrb[0].mxu0
        %1539 = vmatprep.mubr.bf16.mxu0 0
        %1540 = vmatmul.mubr.bf16.gmra.mrb[0].mxu0 %v1405
        %v1541 = vpop.f32.mrb[0].mxu0
        %v1542 = vadd.f32 %v1369, %v1541
        %v1543 = vpop.f32.mrb[0].mxu0
        %v1544 = vpop.f32.mrb[0].mxu0
        %v1545 = vadd.f32 %v1369, %v1544
        %v1546 = vpop.f32.mrb[0].mxu0
        %1547 = vmatprep.mubr.bf16.mxu0 0
        %1548 = vmatmul.mubr.bf16.gmra.mrb[0].mxu0 %v1408
        %v1549 = vpop.f32.mrb[0].mxu0
        %v1550 = vadd.f32 %v1369, %v1549
        %v1551 = vpop.f32.mrb[0].mxu0
        %v1552 = vpop.f32.mrb[0].mxu0
        %v1553 = vadd.f32 %v1369, %v1552
        %v1554 = vpop.f32.mrb[0].mxu0
        %1555 = vmatprep.mubr.bf16.mxu0 0
        %1556 = vmatmul.mubr.bf16.gmra.mrb[0].mxu0 %v1411
        %v1557 = vpop.f32.mrb[0].mxu0
        %v1558 = vadd.f32 %v1369, %v1557
        %v1559 = vpop.f32.mrb[0].mxu0
        %v1560 = vpop.f32.mrb[0].mxu0
        %v1561 = vadd.f32 %v1369, %v1560
        %v1562 = vpop.f32.mrb[0].mxu0
        %1563 = vmatprep.mubr.bf16.mxu0 0
        %1564 = vmatmul.mubr.bf16.gmra.mrb[0].mxu0 %v1414
        %v1565 = vpop.f32.mrb[0].mxu0
        %v1566 = vadd.f32 %v1369, %v1565
        %v1567 = vpop.f32.mrb[0].mxu0
        %v1568 = vpop.f32.mrb[0].mxu0
        %v1569 = vadd.f32 %v1369, %v1568
        %v1570 = vpop.f32.mrb[0].mxu0
        %1571 = vmatprep.mubr.bf16.mxu0 0
        %1572 = vmatmul.mubr.bf16.gmra.mrb[0].mxu0 %v1417
        %v1573 = vpop.f32.mrb[0].mxu0
        %v1574 = vadd.f32 %v1369, %v1573
        %v1575 = vpop.f32.mrb[0].mxu0
        %v1576 = vpop.f32.mrb[0].mxu0
        %v1577 = vadd.f32 %v1369, %v1576
        %v1578 = vpop.f32.mrb[0].mxu0
        %1579 = vdwg.mxu0
        %vm1580 = vcmp.gt.f32.partialorder %v1454, 0.0
        %vm1581 = vcmp.gt.f32.partialorder %v1457, 0.0
        %vm1582 = vcmp.gt.f32.partialorder %v1462, 0.0
        %vm1583 = vcmp.gt.f32.partialorder %v1465, 0.0
        %vm1584 = vcmp.gt.f32.partialorder %v1470, 0.0
        %vm1585 = vcmp.gt.f32.partialorder %v1473, 0.0
        %vm1586 = vcmp.gt.f32.partialorder %v1478, 0.0
        %vm1587 = vcmp.gt.f32.partialorder %v1481, 0.0
        %vm1588 = vcmp.gt.f32.partialorder %v1486, 0.0
        %vm1589 = vcmp.gt.f32.partialorder %v1489, 0.0
        %vm1590 = vcmp.gt.f32.partialorder %v1494, 0.0
        %vm1591 = vcmp.gt.f32.partialorder %v1497, 0.0
        %vm1592 = vcmp.gt.f32.partialorder %v1502, 0.0
        %vm1593 = vcmp.gt.f32.partialorder %v1505, 0.0
        %vm1594 = vcmp.gt.f32.partialorder %v1510, 0.0
        %vm1595 = vcmp.gt.f32.partialorder %v1513, 0.0
        %vm1596 = vcmp.gt.f32.partialorder %v1518, 0.0
        %vm1597 = vcmp.gt.f32.partialorder %v1521, 0.0
        %vm1598 = vcmp.gt.f32.partialorder %v1526, 0.0
        %vm1599 = vcmp.gt.f32.partialorder %v1529, 0.0
        %vm1600 = vcmp.gt.f32.partialorder %v1534, 0.0
        %vm1601 = vcmp.gt.f32.partialorder %v1537, 0.0
        %vm1602 = vcmp.gt.f32.partialorder %v1542, 0.0
        %vm1603 = vcmp.gt.f32.partialorder %v1545, 0.0
        %vm1604 = vcmp.gt.f32.partialorder %v1550, 0.0
        %vm1605 = vcmp.gt.f32.partialorder %v1553, 0.0
        %vm1606 = vcmp.gt.f32.partialorder %v1558, 0.0
        %vm1607 = vcmp.gt.f32.partialorder %v1561, 0.0
        %vm1608 = vcmp.gt.f32.partialorder %v1566, 0.0
        %vm1609 = vcmp.gt.f32.partialorder %v1569, 0.0
        %vm1610 = vcmp.gt.f32.partialorder %v1574, 0.0
        %vm1611 = vcmp.gt.f32.partialorder %v1577, 0.0
        %v1612 = vmul.f32 %v1454, 0.01
        %v1613 = vmul.f32 %v1457, 0.01
        %v1614 = vmul.f32 %v1462, 0.01
        %v1615 = vmul.f32 %v1465, 0.01
        %v1616 = vmul.f32 %v1470, 0.01
        %v1617 = vmul.f32 %v1473, 0.01
        %v1618 = vmul.f32 %v1478, 0.01
        %v1619 = vmul.f32 %v1481, 0.01
        %v1620 = vmul.f32 %v1486, 0.01
        %v1621 = vmul.f32 %v1489, 0.01
        %v1622 = vmul.f32 %v1494, 0.01
        %v1623 = vmul.f32 %v1497, 0.01
        %v1624 = vmul.f32 %v1502, 0.01
        %v1625 = vmul.f32 %v1505, 0.01
        %v1626 = vmul.f32 %v1510, 0.01
        %v1627 = vmul.f32 %v1513, 0.01
        %v1628 = vmul.f32 %v1518, 0.01
        %v1629 = vmul.f32 %v1521, 0.01
        %v1630 = vmul.f32 %v1526, 0.01
        %v1631 = vmul.f32 %v1529, 0.01
        %v1632 = vmul.f32 %v1534, 0.01
        %v1633 = vmul.f32 %v1537, 0.01
        %v1634 = vmul.f32 %v1542, 0.01
        %v1635 = vmul.f32 %v1545, 0.01
        %v1636 = vmul.f32 %v1550, 0.01
        %v1637 = vmul.f32 %v1553, 0.01
        %v1638 = vmul.f32 %v1558, 0.01
        %v1639 = vmul.f32 %v1561, 0.01
        %v1640 = vmul.f32 %v1566, 0.01
        %v1641 = vmul.f32 %v1569, 0.01
        %v1642 = vmul.f32 %v1574, 0.01
        %v1643 = vmul.f32 %v1577, 0.01
        %v1644 = vsel %vm1580, %v1454, %v1612
        %v1645 = vsel %vm1581, %v1457, %v1613
        %v1646 = vsel %vm1582, %v1462, %v1614
        %v1647 = vsel %vm1583, %v1465, %v1615
        %v1648 = vsel %vm1584, %v1470, %v1616
        %v1649 = vsel %vm1585, %v1473, %v1617
        %v1650 = vsel %vm1586, %v1478, %v1618
        %v1651 = vsel %vm1587, %v1481, %v1619
        %v1652 = vsel %vm1588, %v1486, %v1620
        %v1653 = vsel %vm1589, %v1489, %v1621
        %v1654 = vsel %vm1590, %v1494, %v1622
        %v1655 = vsel %vm1591, %v1497, %v1623
        %v1656 = vsel %vm1592, %v1502, %v1624
        %v1657 = vsel %vm1593, %v1505, %v1625
        %v1658 = vsel %vm1594, %v1510, %v1626
        %v1659 = vsel %vm1595, %v1513, %v1627
        %v1660 = vsel %vm1596, %v1518, %v1628
        %v1661 = vsel %vm1597, %v1521, %v1629
        %v1662 = vsel %vm1598, %v1526, %v1630
        %v1663 = vsel %vm1599, %v1529, %v1631
        %v1664 = vsel %vm1600, %v1534, %v1632
        %v1665 = vsel %vm1601, %v1537, %v1633
        %v1666 = vsel %vm1602, %v1542, %v1634
        %v1667 = vsel %vm1603, %v1545, %v1635
        %v1668 = vsel %vm1604, %v1550, %v1636
        %v1669 = vsel %vm1605, %v1553, %v1637
        %v1670 = vsel %vm1606, %v1558, %v1638
        %v1671 = vsel %vm1607, %v1561, %v1639
        %v1672 = vsel %vm1608, %v1566, %v1640
        %v1673 = vsel %vm1609, %v1569, %v1641
        %v1674 = vsel %vm1610, %v1574, %v1642
        %v1675 = vsel %vm1611, %v1577, %v1643
        %v1676 = vstv %s466
        %1677 = vrot.lane.b32.xlu0 %v1355, 80
        %v1678 = vpop.permute.xlu0 %1677
        %v1679 = vsel %vm488, %v1678, 0
        %v1682 = vsel %vm488, %v1644, 0
        %v1685 = vsel %vm488, %v1645, 0
        %v1688 = vsel %vm488, %v1646, 0
        %v1691 = vsel %vm488, %v1647, 0
        %v1694 = vsel %vm488, %v1648, 0
        %v1697 = vsel %vm488, %v1649, 0
        %v1700 = vsel %vm488, %v1650, 0
        %v1703 = vsel %vm488, %v1651, 0
        %v1706 = vsel %vm488, %v1652, 0
        %v1709 = vsel %vm488, %v1653, 0
        %v1712 = vsel %vm488, %v1654, 0
        %v1715 = vsel %vm488, %v1655, 0
        %v1718 = vsel %vm488, %v1656, 0
        %v1721 = vsel %vm488, %v1657, 0
        %v1724 = vsel %vm488, %v1658, 0
        %v1727 = vsel %vm488, %v1659, 0
        %v1730 = vsel %vm488, %v1660, 0
        %v1733 = vsel %vm488, %v1661, 0
        %v1736 = vsel %vm488, %v1662, 0
        %v1739 = vsel %vm488, %v1663, 0
        %v1742 = vsel %vm488, %v1664, 0
        %v1745 = vsel %vm488, %v1665, 0
        %v1748 = vsel %vm488, %v1666, 0
        %v1751 = vsel %vm488, %v1667, 0
        %v1754 = vsel %vm488, %v1668, 0
        %v1757 = vsel %vm488, %v1669, 0
        %v1760 = vsel %vm488, %v1670, 0
        %v1763 = vsel %vm488, %v1671, 0
        %v1766 = vsel %vm488, %v1672, 0
        %v1769 = vsel %vm488, %v1673, 0
        %v1772 = vsel %vm488, %v1674, 0
        %v1775 = vsel %vm488, %v1675, 0
        %1777 = vmatprep.subr.mxu0 0.0
        %1778 = vmatpush1.xpose.msra.mxu0 %v1682
        %1779 = vmatprep.subr.mxu0 0.0
        %1780 = vmatpush1.xpose.msra.mxu0 %v1685
        %1781 = vmatprep.subr.mxu0 0.0
        %1782 = vmatpush1.xpose.msra.mxu0 %v1688
        %1783 = vmatprep.subr.mxu0 0.0
        %1784 = vmatpush1.xpose.msra.mxu0 %v1691
        %1785 = vmatprep.subr.mxu0 0.0
        %1786 = vmatpush1.xpose.msra.mxu0 %v1694
        %1787 = vmatprep.subr.mxu0 0.0
        %1788 = vmatpush1.xpose.msra.mxu0 %v1697
        %1789 = vmatprep.subr.mxu0 0.0
        %1790 = vmatpush1.xpose.msra.mxu0 %v1700
        %1791 = vmatprep.subr.mxu0 0.0
        %1792 = vmatpush1.xpose.msra.mxu0 %v1703
        %1793 = vmatprep.subr.mxu0 0.0
        %1794 = vmatpush1.xpose.msra.mxu0 %v1706
        %1795 = vmatprep.subr.mxu0 0.0
        %1796 = vmatpush1.xpose.msra.mxu0 %v1709
        %1797 = vmatprep.subr.mxu0 0.0
        %1798 = vmatpush1.xpose.msra.mxu0 %v1712
        %1799 = vmatprep.subr.mxu0 0.0
        %1800 = vmatpush1.xpose.msra.mxu0 %v1715
        %1801 = vmatprep.subr.mxu0 0.0
        %1802 = vmatpush1.xpose.msra.mxu0 %v1718
        %1803 = vmatprep.subr.mxu0 0.0
        %1804 = vmatpush1.xpose.msra.mxu0 %v1721
        %1805 = vmatprep.subr.mxu0 0.0
        %1806 = vmatpush1.xpose.msra.mxu0 %v1724
        %1807 = vmatprep.subr.mxu0 0.0
        %1808 = vmatpush1.xpose.msra.mxu0 %v1727
        %1809 = vmatprep.subr.mxu0 0.0
        %1810 = vmatpush1.xpose.msra.mxu0 %v1730
        %1811 = vmatprep.subr.mxu0 0.0
        %1812 = vmatpush1.xpose.msra.mxu0 %v1733
        %1813 = vmatprep.subr.mxu0 0.0
        %1814 = vmatpush1.xpose.msra.mxu0 %v1736
        %1815 = vmatprep.subr.mxu0 0.0
        %1816 = vmatpush1.xpose.msra.mxu0 %v1739
        %1817 = vmatprep.subr.mxu0 0.0
        %1818 = vmatpush1.xpose.msra.mxu0 %v1742
        %1819 = vmatprep.subr.mxu0 0.0
        %1820 = vmatpush1.xpose.msra.mxu0 %v1745
        %1821 = vmatprep.subr.mxu0 0.0
        %1822 = vmatpush1.xpose.msra.mxu0 %v1748
        %1823 = vmatprep.subr.mxu0 0.0
        %1824 = vmatpush1.xpose.msra.mxu0 %v1751
        %1825 = vmatprep.subr.mxu0 0.0
        %1826 = vmatpush1.xpose.msra.mxu0 %v1754
        %1827 = vmatprep.subr.mxu0 0.0
        %1828 = vmatpush1.xpose.msra.mxu0 %v1757
        %1829 = vmatprep.subr.mxu0 0.0
        %1830 = vmatpush1.xpose.msra.mxu0 %v1760
        %1831 = vmatprep.subr.mxu0 0.0
        %1832 = vmatpush1.xpose.msra.mxu0 %v1763
        %1833 = vmatprep.subr.mxu0 0.0
        %1834 = vmatpush1.xpose.msra.mxu0 %v1766
        %1835 = vmatprep.subr.mxu0 0.0
        %1836 = vmatpush1.xpose.msra.mxu0 %v1769
        %1837 = vmatprep.subr.mxu0 0.0
        %1838 = vmatpush1.xpose.msra.mxu0 %v1772
        %1839 = vmatprep.subr.mxu0 0.0
        %1840 = vmatpush1.xpose.msra.mxu0 %v1775
        %1841 = vmatprep.mubr.f32.mxu0 0.0
        %1842 = vmatmul.mubr.f32.gmra.mrb[0].mxu0 %v1679
        %v1843 = vpop.f32.mrb[0].mxu0
        %v1844 = vadd.f32 %v1676, %v1843
        %v1845 = vpop.f32.mrb[0].mxu0
        %v1846 = vadd.f32 %v1676, %v1845
        %1847 = vdwg.mxu0
        %v1848 = vxor.u32 %v1844, 2147483648
        %v1849 = vxor.u32 %v1846, 2147483648
        %v1850 = vmul.f32 %v1848, 1.442695
        %v1851 = vpow.pop %v1850
        %v1852 = vmul.f32 %v1849, 1.442695
        %v1853 = vpow.pop %v1852
        %v1854 = vadd.f32 %v1851, 1.0
        %v1855 = vadd.f32 %v1853, 1.0
        %v1856 = vrcp.pop %v1854
        %v1857 = vmul.f32 1.0, %v1856
        %v1858 = vrcp.pop %v1855
        %v1859 = vmul.f32 1.0, %v1858
        %v1862 = vcombine.low %v1857, %v1859
        %v1864 = vunpack.c.l.s4 1966171168
        %v1865 = vunpack.c.0.s8 %v1864
        %v1866 = vlaneseq
        %v1867 = vshrl.u32 %v1866, 7
        %v1868 = vsub.s32 %v1865, %v1867
        %v1869 = vrot.slane %v1862, %v1868
        %v1871 = vunpack.c.l.s4 1966171168
        %v1872 = vunpack.c.0.s8 %v1871
        %v1873 = vlaneseq
        %v1874 = vshrl.u32 %v1873, 7
        %v1875 = vsub.s32 %v1872, %v1874
        %v1876 = vrot.slane %v1869, %v1875
        %v1878 = vlaneseq
        %vm1879 = vcmp.ge.s32.totalorder %v1878, 0
        %vm1880 = vcmp.lt.s32.totalorder %v1878, 256
        %vm1881 = vmand %vm1879, %vm1880
        %1882 = vst.msk [vmem:[%s458] sm:$0x3] %vm1881, %v1876
        %v1883 = vld [vmem:[%s454] sm:$0x3]
        %v1885 = vlaneseq
        %v1886 = vshrl.u32 %v1885, 7
        %v1887 = vsub.s32 0, %v1886
        %v1888 = vrot.slane %v1883, %v1887
        %v1889 = vlaneseq
        %v1890 = vshrl.u32 %v1889, 7
        %v1891 = vsub.s32 1, %v1890
        %v1892 = vrot.slane %v1883, %v1891
        %v1895 = vmul.f32 %v1857, %v1888
        %v1896 = vmul.f32 %v1859, %v1892
        %vm1897 = vcmask 1040384
        %v1898 = vsel %vm1897, %v1895, 0.0
        %v1899 = vsel %vm1897, %v1896, 0.0
        %v1900 = vadd.f32 %v1898, %v1899
        %1901 = vadd.xlane.f32.xlu0 %v1900
        %v1902 = vpop.xlane.xlu0 %1901
        %v1903 = vsel %vm1897, %v1857, 0.0
        %v1904 = vsel %vm1897, %v1859, 0.0
        %v1905 = vadd.f32 %v1903, %v1904
        %1906 = vadd.xlane.f32.xlu0 %v1905
        %v1907 = vpop.xlane.xlu0 %1906
        %v1908 = vstv %s465
        %v1909 = vsub.f32 %v1907, %v1908
        %v1910 = vand.u32 2147483647, %v1909
        %v1911 = vsel %vm1897, %v1857, -inf
        %v1912 = vsel %vm1897, %v1859, -inf
        %v1913 = vmax.f32 %v1911, %v1912
        %1914 = vmax.xlane.f32.xlu0 %v1913
        %v1915 = vpop.xlane.xlu0 %1914
        %v1916 = vsub.f32 %v1857, %v1915
        %v1917 = vsub.f32 %v1859, %v1915
        %v1918 = vmul.f32 %v1916, 1.442695
        %v1919 = vpow.pop %v1918
        %v1920 = vmul.f32 %v1917, 1.442695
        %v1921 = vpow.pop %v1920
        %v1922 = vsel %vm1897, %v1919, 0.0
        %v1923 = vsel %vm1897, %v1921, 0.0
        %v1924 = vadd.f32 %v1922, %v1923
        %1925 = vadd.xlane.f32.xlu0 %v1924
        %v1926 = vpop.xlane.xlu0 %1925
        %v1927 = vlog2.pop %v1926
        %v1928 = vmul.f32 %v1927, 0.6931472
        %v1929 = vadd.f32 %v1915, %v1928
        %v1930 = vmul.f32 %v1919, %v1857
        %v1931 = vmul.f32 %v1921, %v1859
        %v1932 = vsel %vm1897, %v1930, 0.0
        %v1933 = vsel %vm1897, %v1931, 0.0
        %v1934 = vadd.f32 %v1932, %v1933
        %1935 = vadd.xlane.f32.xlu0 %v1934
        %v1936 = vpop.xlane.xlu0 %1935
        %v1937 = vrcp.pop %v1926
        %v1938 = vmul.f32 %v1936, %v1937
        %v1939 = vsub.f32 %v1929, %v1938
        %v1940 = vstv %s463
        %v1941 = vmul.f32 %v1940, %v1910
        %v1942 = vadd.f32 %v1902, %v1941
        %v1943 = vstv %s464
        %v1944 = vmul.f32 %v1943, %v1939
        %v1945 = vsub.f32 %v1942, %v1944
        %1946 = vst [vmem:[%s461] sm:$0x1] %v1945
        %p1947 = scmp.lt.s32.totalorder %s24, 3
        %s1948 = scalar_select %p1947, %s24, 3
        %s1949 = smul.addr %s1948, 2
        %s1950 = scalar_lea.vmem %s10, %s1949
        %p1951 = scmp.lt.s32.totalorder %s24, 3
        %s1952 = scalar_select %p1951, %s24, 3
        %s1953 = scalar_lea.vmem %s11, %s1952
        // Predicated region
        $region65: #{soft_selector_forward_batched.1} parent=59 // pred_check
          %p1954 = pneg %p272
        $region66: #{soft_selector_forward_batched.1} parent=59 // pred_check_branch
          %1956 = sbr.rel (%p1954) target = $region68
        $region67: #{soft_selector_forward_batched.1} parent=59 // pred_region
          _
        $region68: #{soft_selector_forward_batched.1} parent=59 // pred_fallthru
          _
        // Predicated region
        $region69: #{soft_selector_forward_batched.1} parent=59 // pred_check
          %p1957 = pneg %p298
        $region70: #{soft_selector_forward_batched.1} parent=59 // pred_check_branch
          %1959 = sbr.rel (%p1957) target = $region72
        $region71: #{soft_selector_forward_batched.1} parent=59 // pred_region
          _
        $region72: #{soft_selector_forward_batched.1} parent=59 // pred_fallthru
          _
      $region60: #{soft_selector_forward_batched.1} parent=5 // pred_fallthru
        _
      %p1960 = scmp.le.s32.totalorder 2, %s19
      // Predicated region
      $region73: #{soft_selector_forward_batched.1} parent=5 // pred_check
        %p1961 = pneg %p1960
      $region74: #{soft_selector_forward_batched.1} parent=5 // pred_check_branch
        %1963 = sbr.rel (%p1961) target = $region76
      $region75: #{soft_selector_forward_batched.1} parent=5 // pred_region
        %s1964 = ssub.s32 %s19, 2
        // Predicated region
        $region77: #{soft_selector_forward_batched.1} parent=75 // pred_check
          %p1965 = pneg %p278
        $region78: #{soft_selector_forward_batched.1} parent=75 // pred_check_branch
          %1967 = sbr.rel (%p1965) target = $region80
        $region79: #{soft_selector_forward_batched.1} parent=75 // pred_region
          %p1968 = scmp.lt.s32.totalorder %s25, 3
          %s1969 = scalar_select %p1968, %s25, 3
          %s1970 = smul.addr %s1969, 2
          %s1971 = scalar_lea.vmem %s10, %s1970
        $region80: #{soft_selector_forward_batched.1} parent=75 // pred_fallthru
          _
        // Predicated region
        $region81: #{soft_selector_forward_batched.1} parent=75 // pred_check
          %p1972 = pneg %p304
        $region82: #{soft_selector_forward_batched.1} parent=75 // pred_check_branch
          %1974 = sbr.rel (%p1972) target = $region84
        $region83: #{soft_selector_forward_batched.1} parent=75 // pred_region
          %p1975 = scmp.lt.s32.totalorder %s25, 3
          %s1976 = scalar_select %p1975, %s25, 3
          %s1977 = scalar_lea.vmem %s11, %s1976
        $region84: #{soft_selector_forward_batched.1} parent=75 // pred_fallthru
          _
      $region76: #{soft_selector_forward_batched.1} parent=5 // pred_fallthru
        _
    $region6: #{soft_selector_forward_batched.1} parent=1 // loop_footer
      %s23 = sadd.s32 1, %s19
    $region7: #{soft_selector_forward_batched.1} parent=1 // loop_footer_branch
      %18 = sbr.rel target = $region3
    $region8: #{soft_selector_forward_batched.1} parent=1 // loop_exit
      _
    %1978 = vsyncpa [#allocation3], 1
    %s1979 = scalar_lea.sflag [#allocation3], 1
    %1980 = vsyncpa %s1979, 1

</llo_original>
